<compile_context>
chip_gen: v5e
topology: v5e:2x2
jax: 0.10.0
libtpu: 0.0.40
codegen_flags: <defaults>
</compile_context>

<pallas_src>
import functools

import jax
import jax.numpy as jnp
import numpy as np
from jax.experimental import pallas as pl
from jax.experimental.pallas import tpu as pltpu


# ---------------------------------------------------------------------------
# Pallas kernel: full forward for one (padded) batch of sequences.
# ---------------------------------------------------------------------------
def lstm_attn_kernel(idx_ref,      # [T*Bp, 2] int32, time-major (tag, val) indices
                     emb_ref,      # [Vt+Vv, E] f32, block-diagonal embedding table
                     wih_ref,      # [E, 4H]  bf16  LSTM input weights (i,f,g,o)
                     whh_ref,      # [H, 4H]  bf16  LSTM hidden weights (i,f,g,o)
                     b_ref,        # [1, 4H]  f32   b_ih + b_hh
                     wm_ref,       # [H, H]   bf16  attention Wm^T
                     whg_ref,      # [H, 2H]  bf16  [Wh^T | Wg_top^T] fused
                     v_ref,        # [H, 1]   f32   attention v^T
                     wg_bot_ref,   # [H, H]   bf16  rows H:2H of Wg^T (multiplies ct)
                     wf_ref,       # [H, Vp]  bf16  final linear, lane-padded
                     bf_ref,       # [1, Vp]  f32   final bias, -1e30 on pad lanes
                     out_ref,      # [Bp, Vp] f32   log-probabilities (padded)
                     hs_ref,       # [(T-1)*Bp, H] f32 scratch: hidden states t=0..T-2
                     *, vt):       # static: tag vocab size (offset into stacked table)
    f32 = jnp.float32
    bf16 = jnp.bfloat16
    Bp, Vp = out_ref.shape
    TB = idx_ref.shape[0]
    T = TB // Bp
    H = whh_ref.shape[0]
    Vtot, E = emb_ref.shape

    # ---- fused embedding lookup: block-diagonal one-hot matmul == gather + concat ----
    idx = idx_ref[...]                                    # [T*Bp, 2]
    tags = idx[:, 0:1]
    vals = idx[:, 1:2] + vt                               # offset into stacked table rows
    iota = jax.lax.broadcasted_iota(jnp.int32, (TB, Vtot), 1)
    onehot = jnp.logical_or(iota == tags, iota == vals).astype(f32)
    embeds = jnp.dot(onehot, emb_ref[...], preferred_element_type=f32)   # [T*Bp, E]

    # ---- hoisted input projection: one batched matmul, off the serial critical path ----
    gates_x = (jnp.dot(embeds.astype(bf16), wih_ref[...], preferred_element_type=f32)
               + b_ref[...])                                             # [T*Bp, 4H]

    # ---- serial LSTM recurrence (PyTorch gate order i,f,g,o), unrolled (T small) ----
    # NOTE: skipping h @ whh at t == 0 is only valid because h0 == c0 == 0 and b_hh is
    # pre-folded into b_ref; revisit if a nonzero initial state / separate biases appear.
    # TODO(synk): hold whh resident in MXU weight regs across steps via
    # pltpu.matmul_push_rhs / matmul_acc_lhs / matmul_pop once that path is validated.
    whh = whh_ref[...]
    h = jnp.zeros((Bp, H), f32)
    c = jnp.zeros((Bp, H), f32)
    for t in range(T):
        gx = gates_x[t * Bp:(t + 1) * Bp, :]                             # aligned 8-row slice
        if t == 0:
            gates = gx
        else:
            gates = gx + jnp.dot(h.astype(bf16), whh, preferred_element_type=f32)
        sig = jax.nn.sigmoid(gates)          # two full-width EUP pushes (extra cols unused)
        tah = jnp.tanh(gates)
        i_g = sig[:, 0 * H:1 * H]
        f_g = sig[:, 1 * H:2 * H]
        g_g = tah[:, 2 * H:3 * H]
        o_g = sig[:, 3 * H:4 * H]
        c = f_g * c + i_g * g_g
        h = o_g * jnp.tanh(c)
        if t < T - 1:
            hs_ref[t * Bp:(t + 1) * Bp, :] = h                           # aligned 8-row store
    last_h = h                                                           # [Bp, H]

    # ---- batched additive attention: At = v^T tanh(Wm mt + Wh last_h) ----
    Tm1 = T - 1
    mt_flat = hs_ref[...]                                                # [(T-1)*Bp, H]
    wm_mt = jnp.dot(mt_flat.astype(bf16), wm_ref[...], preferred_element_type=f32)
    proj = jnp.dot(last_h.astype(bf16), whg_ref[...], preferred_element_type=f32)  # [Bp, 2H]
    wh_last = proj[:, 0:H]
    g_top = proj[:, H:2 * H]
    # leading-dim reshapes are layout-trivial (each 8-row block is one sublane tile)
    att = jnp.tanh(wm_mt.reshape(Tm1, Bp, H) + wh_last[None, :, :])      # broadcast, no concat
    scores = jnp.dot(att.reshape(Tm1 * Bp, H), v_ref[...], preferred_element_type=f32)
    s3 = scores.reshape(Tm1, Bp, 1)                                      # [T-1, Bp, 1]

    # softmax over time + context, via single leading-axis reductions (no Python chains)
    m = jnp.max(s3, axis=0)                                              # [Bp, 1]
    e3 = jnp.exp(s3 - m[None, :, :])                                     # [T-1, Bp, 1]
    den = jnp.sum(e3, axis=0)                                            # [Bp, 1]
    num = jnp.sum(mt_flat.reshape(Tm1, Bp, H) * e3, axis=0)              # [Bp, H]
    ct = num / den                                                       # [Bp, H]

    # ---- gated head (concat-free) + lane-padded final projection + log_softmax ----
    Gt = jnp.tanh(g_top + jnp.dot(ct.astype(bf16), wg_bot_ref[...],
                                  preferred_element_type=f32))           # [Bp, H]
    logits = (jnp.dot(Gt.astype(bf16), wf_ref[...], preferred_element_type=f32)
              + bf_ref[...])                                             # [Bp, Vp]
    lmax = jnp.max(logits, axis=1, keepdims=True)
    shifted = logits - lmax                                              # pad lanes ~ -1e30
    lse = jnp.log(jnp.sum(jnp.exp(shifted), axis=1, keepdims=True))      # pad lanes add 0
    out_ref[...] = shifted - lse


# ---------------------------------------------------------------------------
# One-time weight prep (hoisted out of the per-call path).
# ---------------------------------------------------------------------------
def prepare_params(params):
    H = params["whh_T"].shape[0]
    V = params["wf_T"].shape[1]
    Vp = ((V + 127) // 128) * 128
    Vt, Et = params["tag_emb"].shape
    Vv, Ev = params["val_emb"].shape
    E = Et + Ev
    bf16 = jnp.bfloat16

    # block-diagonal table: one-hot matmul against it == gather(tag) ++ gather(val)
    emb = jnp.zeros((Vt + Vv, E), jnp.float32)
    emb = emb.at[:Vt, :Et].set(params["tag_emb"])
    emb = emb.at[Vt:, Et:].set(params["val_emb"])

    return {
        "emb": emb,                                               # f32: keep "gather" exact
        "wih": params["wih_T"].astype(bf16),
        "whh": params["whh_T"].astype(bf16),
        "bias": params["bias"].astype(jnp.float32),
        "wm": params["wm_T"].astype(bf16),
        "whg": jnp.concatenate([params["wh_T"], params["wg_T"][:H, :]], axis=1).astype(bf16),
        "v": params["v_w"].astype(jnp.float32),
        "wg_bot": params["wg_T"][H:, :].astype(bf16),
        "wf": jnp.pad(params["wf_T"], ((0, 0), (0, Vp - V))).astype(bf16),
        "bf": jnp.pad(params["bf"], ((0, 0), (0, Vp - V)),
                      constant_values=-1e30).astype(jnp.float32),
        "meta": dict(H=H, V=V, Vp=Vp, E=E, Vt=Vt, Vv=Vv),
    }


def make_forward(prepped, batch, seq_len):
    meta = prepped["meta"]
    H, V, Vp, E, Vt, Vv = (meta[k] for k in ("H", "V", "Vp", "E", "Vt", "Vv"))
    B, T = batch, seq_len
    assert T >= 2, "AtentionModel attention window requires seq_len >= 2"
    Bp = ((B + 7) // 8) * 8                                       # sublane-aligned batch
    TB = T * Bp
    Vtot = Vt + Vv

    flops = (2 * TB * Vtot * E + 2 * TB * E * 4 * H + 2 * (T - 1) * Bp * H * 4 * H
             + 2 * (T - 1) * Bp * H * H + 2 * Bp * H * 2 * H + 2 * (T - 1) * Bp * H
             + 2 * Bp * H * H + 2 * Bp * H * Vp)
    transc = T * Bp * 9 * H + (T - 1) * Bp * (H + 1) + Bp * H + Bp * (Vp + 1)
    weight_keys = ("emb", "wih", "whh", "bias", "wm", "whg", "v", "wg_bot", "wf", "bf")
    bytes_accessed = (TB * 2 * 4 + Bp * Vp * 4
                      + sum(int(prepped[k].size) * prepped[k].dtype.itemsize
                            for k in weight_keys))

    kernel = functools.partial(lstm_attn_kernel, vt=Vt)
    vmem = pltpu.MemorySpace.VMEM

    @jax.jit
    def forward(sentence):
        # tiny per-call glue: time-major layout + sublane batch padding of the int indices
        idx = jnp.transpose(sentence, (1, 0, 2)).astype(jnp.int32)       # [T, B, 2]
        idx = jnp.pad(idx, ((0, 0), (0, Bp - B), (0, 0)))                # [T, Bp, 2]
        idx = idx.reshape(TB, 2)

        out_pad = pl.pallas_call(
            kernel,
            out_shape=jax.ShapeDtypeStruct((Bp, Vp), jnp.float32),
            in_specs=[pl.BlockSpec(memory_space=vmem)] * 11,
            out_specs=pl.BlockSpec(memory_space=vmem),
            scratch_shapes=[pltpu.VMEM(((T - 1) * Bp, H), jnp.float32)],
            cost_estimate=pl.CostEstimate(flops=flops, transcendentals=transc,
                                          bytes_accessed=bytes_accessed),
        )(idx, prepped["emb"], prepped["wih"], prepped["whh"], prepped["bias"],
          prepped["wm"], prepped["whg"], prepped["v"], prepped["wg_bot"],
          prepped["wf"], prepped["bf"])
        # TODO(synk): when B / V grow, add a "parallel" batch grid axis (engage v7x's 2nd
        # TensorCore) and tile wf over Vp with an online log-sum-exp to stay under v7x's
        # 64 MiB VMEM, with BlockSpec auto-pipelining over batch chunks.
        return out_pad[:B, :V]

    return forward


# ---------------------------------------------------------------------------
# Pure-JAX reference (mirrors the PyTorch forward) for a correctness check.
# ---------------------------------------------------------------------------
def reference_forward(sentence, params):
    tags = sentence[:, :, 0]
    vals = sentence[:, :, 1]
    emb_t = jnp.take(params["tag_emb"], tags, axis=0)
    emb_v = jnp.take(params["val_emb"], vals, axis=0)
    embeds = jnp.concatenate([emb_t, emb_v], axis=2)                 # [B, T, E]
    B, T, _ = embeds.shape
    H = params["whh_T"].shape[0]

    h = jnp.zeros((B, H), jnp.float32)
    c = jnp.zeros((B, H), jnp.float32)
    outs = []
    for t in range(T):
        gates = embeds[:, t, :] @ params["wih_T"] + h @ params["whh_T"] + params["bias"]
        i_g = jax.nn.sigmoid(gates[:, 0 * H:1 * H])
        f_g = jax.nn.sigmoid(gates[:, 1 * H:2 * H])
        g_g = jnp.tanh(gates[:, 2 * H:3 * H])
        o_g = jax.nn.sigmoid(gates[:, 3 * H:4 * H])
        c = f_g * c + i_g * g_g
        h = o_g * jnp.tanh(c)
        outs.append(h)
    lstm_out = jnp.stack(outs, axis=1)                               # [B, T, H]
    last_h = h
    mt = lstm_out[:, :-1, :]                                         # [B, T-1, H]
    At = jnp.tanh(mt @ params["wm_T"] + (last_h @ params["wh_T"])[:, None, :]) @ params["v_w"]
    alfa = jax.nn.softmax(At, axis=1)                                # [B, T-1, 1]
    ct = jnp.squeeze(jnp.transpose(mt, (0, 2, 1)) @ alfa, axis=2)    # [B, H]
    Gt = jnp.tanh(jnp.concatenate([last_h, ct], axis=1) @ params["wg_T"])
    logits = Gt @ params["wf_T"] + params["bf"]
    return jax.nn.log_softmax(logits, axis=1)


# ---------------------------------------------------------------------------
if __name__ == "__main__":
    # Small, module-consistent shapes
    vocab_size_tag = 12
    vocab_size_val = 20
    embedding_dim_tag = 8
    embedding_dim_val = 8
    hidden_dim = 32
    layer_cnt = 1          # forward's last_h.squeeze(dim=0) implies a single layer
    for_val = False        # final head maps to vocab_size_tag
    B, T = 2, 8
    E = embedding_dim_tag + embedding_dim_val
    H = hidden_dim
    V = vocab_size_tag if not for_val else vocab_size_val

    key = jax.random.PRNGKey(0)
    ks = jax.random.split(key, 12)
    scale = 0.1
    params = {
        "tag_emb": scale * jax.random.normal(ks[0], (vocab_size_tag, embedding_dim_tag), jnp.float32),
        "val_emb": scale * jax.random.normal(ks[1], (vocab_size_val, embedding_dim_val), jnp.float32),
        # LSTM weights, pre-transposed to [in, out], gate order i,f,g,o
        "wih_T": scale * jax.random.normal(ks[2], (E, 4 * H), jnp.float32),
        "whh_T": scale * jax.random.normal(ks[3], (H, 4 * H), jnp.float32),
        "bias":  scale * jax.random.normal(ks[4], (1, 4 * H), jnp.float32),  # b_ih + b_hh combined
        # attention / head weights, pre-transposed to [in, out]
        "wm_T":  scale * jax.random.normal(ks[5], (H, H), jnp.float32),
        "wh_T":  scale * jax.random.normal(ks[6], (H, H), jnp.float32),
        "v_w":   scale * jax.random.normal(ks[7], (H, 1), jnp.float32),
        "wg_T":  scale * jax.random.normal(ks[8], (2 * H, H), jnp.float32),
        "wf_T":  scale * jax.random.normal(ks[9], (H, V), jnp.float32),
        "bf":    scale * jax.random.normal(ks[10], (1, V), jnp.float32),
    }

    sentence = jnp.stack(
        [jax.random.randint(ks[11], (B, T), 0, vocab_size_tag, dtype=jnp.int32),
         jax.random.randint(jax.random.fold_in(ks[11], 1), (B, T), 0, vocab_size_val, dtype=jnp.int32)],
        axis=2)                                                      # [B, T, 2]

    prepped = prepare_params(params)                 # one-time weight prep (hoisted)
    forward = make_forward(prepped, batch=B, seq_len=T)

    out = jax.block_until_ready(forward(sentence))
    ref = jax.block_until_ready(reference_forward(sentence, params))

    assert out.shape == (B, V)
    # bf16 MXU inputs (f32 accumulation) => slightly looser tolerance than pure f32
    assert np.allclose(np.asarray(out), np.asarray(ref), rtol=2e-2, atol=2e-2), "mismatch vs reference"

    print("KERNEL_OK")
</pallas_src>

<mosaic_0001>
module attributes {stable_mosaic.version = 11 : i64} {
  func.func @lstm_attn_kernel(%arg0: memref<64x2xi32, #tpu.memory_space<vmem>>, %arg1: memref<32x16xf32, #tpu.memory_space<vmem>>, %arg2: memref<16x128xbf16, #tpu.memory_space<vmem>>, %arg3: memref<32x128xbf16, #tpu.memory_space<vmem>>, %arg4: memref<1x128xf32, #tpu.memory_space<vmem>>, %arg5: memref<32x32xbf16, #tpu.memory_space<vmem>>, %arg6: memref<32x64xbf16, #tpu.memory_space<vmem>>, %arg7: memref<32x1xf32, #tpu.memory_space<vmem>>, %arg8: memref<32x32xbf16, #tpu.memory_space<vmem>>, %arg9: memref<32x128xbf16, #tpu.memory_space<vmem>>, %arg10: memref<1x128xf32, #tpu.memory_space<vmem>>, %arg11: memref<8x128xf32, #tpu.memory_space<vmem>>, %arg12: memref<56x32xf32, #tpu.memory_space<vmem>>) attributes {dimension_semantics = [], scalar_prefetch = 0 : i64, scratch_operands = 1 : i64, tpu.core_type = #tpu.core_type<tc>} {
    %c0 = arith.constant 0 : index
    %c0_0 = arith.constant 0 : index
    %0 = vector.load %arg0[%c0, %c0_0] : memref<64x2xi32, #tpu.memory_space<vmem>>, vector<64x2xi32>
    %1 = vector.extract_strided_slice %0 {offsets = [0, 0], sizes = [64, 1], strides = [1, 1]} : vector<64x2xi32> to vector<64x1xi32>
    %2 = vector.extract_strided_slice %0 {offsets = [0, 1], sizes = [64, 1], strides = [1, 1]} : vector<64x2xi32> to vector<64x1xi32>
    %c12_i32 = arith.constant 12 : i32
    %3 = vector.broadcast %c12_i32 : i32 to vector<64x1xi32>
    %4 = arith.addi %2, %3 : vector<64x1xi32>
    %5 = tpu.iota {dimensions = array<i32: 1>} : vector<64x32xi32>
    %6 = vector.broadcast %1 : vector<64x1xi32> to vector<64x32xi32>
    %7 = arith.cmpi eq, %5, %6 : vector<64x32xi32>
    %8 = vector.broadcast %4 : vector<64x1xi32> to vector<64x32xi32>
    %9 = arith.cmpi eq, %5, %8 : vector<64x32xi32>
    %10 = arith.ori %7, %9 : vector<64x32xi1>
    %11 = arith.extui %10 : vector<64x32xi1> to vector<64x32xi32>
    %12 = arith.sitofp %11 : vector<64x32xi32> to vector<64x32xf32>
    %c0_1 = arith.constant 0 : index
    %c0_2 = arith.constant 0 : index
    %13 = vector.load %arg1[%c0_1, %c0_2] : memref<32x16xf32, #tpu.memory_space<vmem>>, vector<32x16xf32>
    %cst = arith.constant dense<0.000000e+00> : vector<64x16xf32>
    %14 = tpu.matmul %12, %13, %cst {dimension_numbers = #tpu.dot_dimension_numbers<[1], [0], [0], [1], [0, 0, 1, 1], [], []>} : vector<64x32xf32>, vector<32x16xf32>, vector<64x16xf32> -> vector<64x16xf32>
    %15 = arith.truncf %14 : vector<64x16xf32> to vector<64x16xbf16>
    %c0_3 = arith.constant 0 : index
    %c0_4 = arith.constant 0 : index
    %16 = vector.load %arg2[%c0_3, %c0_4] : memref<16x128xbf16, #tpu.memory_space<vmem>>, vector<16x128xbf16>
    %cst_5 = arith.constant dense<0.000000e+00> : vector<64x128xf32>
    %17 = tpu.matmul %15, %16, %cst_5 {dimension_numbers = #tpu.dot_dimension_numbers<[1], [0], [0], [1], [0, 0, 1, 1], [], []>} : vector<64x16xbf16>, vector<16x128xbf16>, vector<64x128xf32> -> vector<64x128xf32>
    %c0_6 = arith.constant 0 : index
    %c0_7 = arith.constant 0 : index
    %18 = vector.load %arg4[%c0_6, %c0_7] : memref<1x128xf32, #tpu.memory_space<vmem>>, vector<1x128xf32>
    %19 = vector.broadcast %18 : vector<1x128xf32> to vector<64x128xf32>
    %20 = arith.addf %17, %19 : vector<64x128xf32>
    %c0_8 = arith.constant 0 : index
    %c0_9 = arith.constant 0 : index
    %21 = vector.load %arg3[%c0_8, %c0_9] : memref<32x128xbf16, #tpu.memory_space<vmem>>, vector<32x128xbf16>
    %cst_10 = arith.constant 0.000000e+00 : f32
    %22 = vector.broadcast %cst_10 : f32 to vector<8x32xf32>
    %23 = vector.extract_strided_slice %20 {offsets = [0, 0], sizes = [8, 128], strides = [1, 1]} : vector<64x128xf32> to vector<8x128xf32>
    %24 = arith.negf %23 : vector<8x128xf32>
    %25 = math.exp %24 : vector<8x128xf32>
    %cst_11 = arith.constant 1.000000e+00 : f32
    %26 = vector.broadcast %cst_11 : f32 to vector<8x128xf32>
    %27 = arith.addf %26, %25 : vector<8x128xf32>
    %28 = arith.divf %26, %27 : vector<8x128xf32>
    %29 = math.tanh %23 : vector<8x128xf32>
    %30 = vector.extract_strided_slice %28 {offsets = [0, 0], sizes = [8, 32], strides = [1, 1]} : vector<8x128xf32> to vector<8x32xf32>
    %31 = vector.extract_strided_slice %28 {offsets = [0, 32], sizes = [8, 32], strides = [1, 1]} : vector<8x128xf32> to vector<8x32xf32>
    %32 = vector.extract_strided_slice %29 {offsets = [0, 64], sizes = [8, 32], strides = [1, 1]} : vector<8x128xf32> to vector<8x32xf32>
    %33 = vector.extract_strided_slice %28 {offsets = [0, 96], sizes = [8, 32], strides = [1, 1]} : vector<8x128xf32> to vector<8x32xf32>
    %34 = arith.mulf %31, %22 : vector<8x32xf32>
    %35 = arith.mulf %30, %32 : vector<8x32xf32>
    %36 = arith.addf %34, %35 : vector<8x32xf32>
    %37 = math.tanh %36 : vector<8x32xf32>
    %38 = arith.mulf %33, %37 : vector<8x32xf32>
    %c0_12 = arith.constant 0 : index
    %c0_13 = arith.constant 0 : index
    %39 = vector.load %arg12[%c0_12, %c0_13] : memref<56x32xf32, #tpu.memory_space<vmem>>, vector<8x32xf32>
    tpu.vector_store %arg12[%c0_12, %c0_13], %38 {strides = array<i32>} : memref<56x32xf32, #tpu.memory_space<vmem>>, vector<8x32xf32>,
    %40 = vector.extract_strided_slice %20 {offsets = [8, 0], sizes = [8, 128], strides = [1, 1]} : vector<64x128xf32> to vector<8x128xf32>
    %41 = arith.truncf %38 : vector<8x32xf32> to vector<8x32xbf16>
    %cst_14 = arith.constant dense<0.000000e+00> : vector<8x128xf32>
    %42 = tpu.matmul %41, %21, %cst_14 {dimension_numbers = #tpu.dot_dimension_numbers<[1], [0], [0], [1], [0, 0, 1, 1], [], []>} : vector<8x32xbf16>, vector<32x128xbf16>, vector<8x128xf32> -> vector<8x128xf32>
    %43 = arith.addf %40, %42 : vector<8x128xf32>
    %44 = arith.negf %43 : vector<8x128xf32>
    %45 = math.exp %44 : vector<8x128xf32>
    %cst_15 = arith.constant 1.000000e+00 : f32
    %46 = vector.broadcast %cst_15 : f32 to vector<8x128xf32>
    %47 = arith.addf %46, %45 : vector<8x128xf32>
    %48 = arith.divf %46, %47 : vector<8x128xf32>
    %49 = math.tanh %43 : vector<8x128xf32>
    %50 = vector.extract_strided_slice %48 {offsets = [0, 0], sizes = [8, 32], strides = [1, 1]} : vector<8x128xf32> to vector<8x32xf32>
    %51 = vector.extract_strided_slice %48 {offsets = [0, 32], sizes = [8, 32], strides = [1, 1]} : vector<8x128xf32> to vector<8x32xf32>
    %52 = vector.extract_strided_slice %49 {offsets = [0, 64], sizes = [8, 32], strides = [1, 1]} : vector<8x128xf32> to vector<8x32xf32>
    %53 = vector.extract_strided_slice %48 {offsets = [0, 96], sizes = [8, 32], strides = [1, 1]} : vector<8x128xf32> to vector<8x32xf32>
    %54 = arith.mulf %51, %36 : vector<8x32xf32>
    %55 = arith.mulf %50, %52 : vector<8x32xf32>
    %56 = arith.addf %54, %55 : vector<8x32xf32>
    %57 = math.tanh %56 : vector<8x32xf32>
    %58 = arith.mulf %53, %57 : vector<8x32xf32>
    %c8 = arith.constant 8 : index
    %c0_16 = arith.constant 0 : index
    %59 = vector.load %arg12[%c8, %c0_16] : memref<56x32xf32, #tpu.memory_space<vmem>>, vector<8x32xf32>
    tpu.vector_store %arg12[%c8, %c0_16], %58 {strides = array<i32>} : memref<56x32xf32, #tpu.memory_space<vmem>>, vector<8x32xf32>,
    %60 = vector.extract_strided_slice %20 {offsets = [16, 0], sizes = [8, 128], strides = [1, 1]} : vector<64x128xf32> to vector<8x128xf32>
    %61 = arith.truncf %58 : vector<8x32xf32> to vector<8x32xbf16>
    %cst_17 = arith.constant dense<0.000000e+00> : vector<8x128xf32>
    %62 = tpu.matmul %61, %21, %cst_17 {dimension_numbers = #tpu.dot_dimension_numbers<[1], [0], [0], [1], [0, 0, 1, 1], [], []>} : vector<8x32xbf16>, vector<32x128xbf16>, vector<8x128xf32> -> vector<8x128xf32>
    %63 = arith.addf %60, %62 : vector<8x128xf32>
    %64 = arith.negf %63 : vector<8x128xf32>
    %65 = math.exp %64 : vector<8x128xf32>
    %cst_18 = arith.constant 1.000000e+00 : f32
    %66 = vector.broadcast %cst_18 : f32 to vector<8x128xf32>
    %67 = arith.addf %66, %65 : vector<8x128xf32>
    %68 = arith.divf %66, %67 : vector<8x128xf32>
    %69 = math.tanh %63 : vector<8x128xf32>
    %70 = vector.extract_strided_slice %68 {offsets = [0, 0], sizes = [8, 32], strides = [1, 1]} : vector<8x128xf32> to vector<8x32xf32>
    %71 = vector.extract_strided_slice %68 {offsets = [0, 32], sizes = [8, 32], strides = [1, 1]} : vector<8x128xf32> to vector<8x32xf32>
    %72 = vector.extract_strided_slice %69 {offsets = [0, 64], sizes = [8, 32], strides = [1, 1]} : vector<8x128xf32> to vector<8x32xf32>
    %73 = vector.extract_strided_slice %68 {offsets = [0, 96], sizes = [8, 32], strides = [1, 1]} : vector<8x128xf32> to vector<8x32xf32>
    %74 = arith.mulf %71, %56 : vector<8x32xf32>
    %75 = arith.mulf %70, %72 : vector<8x32xf32>
    %76 = arith.addf %74, %75 : vector<8x32xf32>
    %77 = math.tanh %76 : vector<8x32xf32>
    %78 = arith.mulf %73, %77 : vector<8x32xf32>
    %c16 = arith.constant 16 : index
    %c0_19 = arith.constant 0 : index
    %79 = vector.load %arg12[%c16, %c0_19] : memref<56x32xf32, #tpu.memory_space<vmem>>, vector<8x32xf32>
    tpu.vector_store %arg12[%c16, %c0_19], %78 {strides = array<i32>} : memref<56x32xf32, #tpu.memory_space<vmem>>, vector<8x32xf32>,
    %80 = vector.extract_strided_slice %20 {offsets = [24, 0], sizes = [8, 128], strides = [1, 1]} : vector<64x128xf32> to vector<8x128xf32>
    %81 = arith.truncf %78 : vector<8x32xf32> to vector<8x32xbf16>
    %cst_20 = arith.constant dense<0.000000e+00> : vector<8x128xf32>
    %82 = tpu.matmul %81, %21, %cst_20 {dimension_numbers = #tpu.dot_dimension_numbers<[1], [0], [0], [1], [0, 0, 1, 1], [], []>} : vector<8x32xbf16>, vector<32x128xbf16>, vector<8x128xf32> -> vector<8x128xf32>
    %83 = arith.addf %80, %82 : vector<8x128xf32>
    %84 = arith.negf %83 : vector<8x128xf32>
    %85 = math.exp %84 : vector<8x128xf32>
    %cst_21 = arith.constant 1.000000e+00 : f32
    %86 = vector.broadcast %cst_21 : f32 to vector<8x128xf32>
    %87 = arith.addf %86, %85 : vector<8x128xf32>
    %88 = arith.divf %86, %87 : vector<8x128xf32>
    %89 = math.tanh %83 : vector<8x128xf32>
    %90 = vector.extract_strided_slice %88 {offsets = [0, 0], sizes = [8, 32], strides = [1, 1]} : vector<8x128xf32> to vector<8x32xf32>
    %91 = vector.extract_strided_slice %88 {offsets = [0, 32], sizes = [8, 32], strides = [1, 1]} : vector<8x128xf32> to vector<8x32xf32>
    %92 = vector.extract_strided_slice %89 {offsets = [0, 64], sizes = [8, 32], strides = [1, 1]} : vector<8x128xf32> to vector<8x32xf32>
    %93 = vector.extract_strided_slice %88 {offsets = [0, 96], sizes = [8, 32], strides = [1, 1]} : vector<8x128xf32> to vector<8x32xf32>
    %94 = arith.mulf %91, %76 : vector<8x32xf32>
    %95 = arith.mulf %90, %92 : vector<8x32xf32>
    %96 = arith.addf %94, %95 : vector<8x32xf32>
    %97 = math.tanh %96 : vector<8x32xf32>
    %98 = arith.mulf %93, %97 : vector<8x32xf32>
    %c24 = arith.constant 24 : index
    %c0_22 = arith.constant 0 : index
    %99 = vector.load %arg12[%c24, %c0_22] : memref<56x32xf32, #tpu.memory_space<vmem>>, vector<8x32xf32>
    tpu.vector_store %arg12[%c24, %c0_22], %98 {strides = array<i32>} : memref<56x32xf32, #tpu.memory_space<vmem>>, vector<8x32xf32>,
    %100 = vector.extract_strided_slice %20 {offsets = [32, 0], sizes = [8, 128], strides = [1, 1]} : vector<64x128xf32> to vector<8x128xf32>
    %101 = arith.truncf %98 : vector<8x32xf32> to vector<8x32xbf16>
    %cst_23 = arith.constant dense<0.000000e+00> : vector<8x128xf32>
    %102 = tpu.matmul %101, %21, %cst_23 {dimension_numbers = #tpu.dot_dimension_numbers<[1], [0], [0], [1], [0, 0, 1, 1], [], []>} : vector<8x32xbf16>, vector<32x128xbf16>, vector<8x128xf32> -> vector<8x128xf32>
    %103 = arith.addf %100, %102 : vector<8x128xf32>
    %104 = arith.negf %103 : vector<8x128xf32>
    %105 = math.exp %104 : vector<8x128xf32>
    %cst_24 = arith.constant 1.000000e+00 : f32
    %106 = vector.broadcast %cst_24 : f32 to vector<8x128xf32>
    %107 = arith.addf %106, %105 : vector<8x128xf32>
    %108 = arith.divf %106, %107 : vector<8x128xf32>
    %109 = math.tanh %103 : vector<8x128xf32>
    %110 = vector.extract_strided_slice %108 {offsets = [0, 0], sizes = [8, 32], strides = [1, 1]} : vector<8x128xf32> to vector<8x32xf32>
    %111 = vector.extract_strided_slice %108 {offsets = [0, 32], sizes = [8, 32], strides = [1, 1]} : vector<8x128xf32> to vector<8x32xf32>
    %112 = vector.extract_strided_slice %109 {offsets = [0, 64], sizes = [8, 32], strides = [1, 1]} : vector<8x128xf32> to vector<8x32xf32>
    %113 = vector.extract_strided_slice %108 {offsets = [0, 96], sizes = [8, 32], strides = [1, 1]} : vector<8x128xf32> to vector<8x32xf32>
    %114 = arith.mulf %111, %96 : vector<8x32xf32>
    %115 = arith.mulf %110, %112 : vector<8x32xf32>
    %116 = arith.addf %114, %115 : vector<8x32xf32>
    %117 = math.tanh %116 : vector<8x32xf32>
    %118 = arith.mulf %113, %117 : vector<8x32xf32>
    %c32 = arith.constant 32 : index
    %c0_25 = arith.constant 0 : index
    %119 = vector.load %arg12[%c32, %c0_25] : memref<56x32xf32, #tpu.memory_space<vmem>>, vector<8x32xf32>
    tpu.vector_store %arg12[%c32, %c0_25], %118 {strides = array<i32>} : memref<56x32xf32, #tpu.memory_space<vmem>>, vector<8x32xf32>,
    %120 = vector.extract_strided_slice %20 {offsets = [40, 0], sizes = [8, 128], strides = [1, 1]} : vector<64x128xf32> to vector<8x128xf32>
    %121 = arith.truncf %118 : vector<8x32xf32> to vector<8x32xbf16>
    %cst_26 = arith.constant dense<0.000000e+00> : vector<8x128xf32>
    %122 = tpu.matmul %121, %21, %cst_26 {dimension_numbers = #tpu.dot_dimension_numbers<[1], [0], [0], [1], [0, 0, 1, 1], [], []>} : vector<8x32xbf16>, vector<32x128xbf16>, vector<8x128xf32> -> vector<8x128xf32>
    %123 = arith.addf %120, %122 : vector<8x128xf32>
    %124 = arith.negf %123 : vector<8x128xf32>
    %125 = math.exp %124 : vector<8x128xf32>
    %cst_27 = arith.constant 1.000000e+00 : f32
    %126 = vector.broadcast %cst_27 : f32 to vector<8x128xf32>
    %127 = arith.addf %126, %125 : vector<8x128xf32>
    %128 = arith.divf %126, %127 : vector<8x128xf32>
    %129 = math.tanh %123 : vector<8x128xf32>
    %130 = vector.extract_strided_slice %128 {offsets = [0, 0], sizes = [8, 32], strides = [1, 1]} : vector<8x128xf32> to vector<8x32xf32>
    %131 = vector.extract_strided_slice %128 {offsets = [0, 32], sizes = [8, 32], strides = [1, 1]} : vector<8x128xf32> to vector<8x32xf32>
    %132 = vector.extract_strided_slice %129 {offsets = [0, 64], sizes = [8, 32], strides = [1, 1]} : vector<8x128xf32> to vector<8x32xf32>
    %133 = vector.extract_strided_slice %128 {offsets = [0, 96], sizes = [8, 32], strides = [1, 1]} : vector<8x128xf32> to vector<8x32xf32>
    %134 = arith.mulf %131, %116 : vector<8x32xf32>
    %135 = arith.mulf %130, %132 : vector<8x32xf32>
    %136 = arith.addf %134, %135 : vector<8x32xf32>
    %137 = math.tanh %136 : vector<8x32xf32>
    %138 = arith.mulf %133, %137 : vector<8x32xf32>
    %c40 = arith.constant 40 : index
    %c0_28 = arith.constant 0 : index
    %139 = vector.load %arg12[%c40, %c0_28] : memref<56x32xf32, #tpu.memory_space<vmem>>, vector<8x32xf32>
    tpu.vector_store %arg12[%c40, %c0_28], %138 {strides = array<i32>} : memref<56x32xf32, #tpu.memory_space<vmem>>, vector<8x32xf32>,
    %140 = vector.extract_strided_slice %20 {offsets = [48, 0], sizes = [8, 128], strides = [1, 1]} : vector<64x128xf32> to vector<8x128xf32>
    %141 = arith.truncf %138 : vector<8x32xf32> to vector<8x32xbf16>
    %cst_29 = arith.constant dense<0.000000e+00> : vector<8x128xf32>
    %142 = tpu.matmul %141, %21, %cst_29 {dimension_numbers = #tpu.dot_dimension_numbers<[1], [0], [0], [1], [0, 0, 1, 1], [], []>} : vector<8x32xbf16>, vector<32x128xbf16>, vector<8x128xf32> -> vector<8x128xf32>
    %143 = arith.addf %140, %142 : vector<8x128xf32>
    %144 = arith.negf %143 : vector<8x128xf32>
    %145 = math.exp %144 : vector<8x128xf32>
    %cst_30 = arith.constant 1.000000e+00 : f32
    %146 = vector.broadcast %cst_30 : f32 to vector<8x128xf32>
    %147 = arith.addf %146, %145 : vector<8x128xf32>
    %148 = arith.divf %146, %147 : vector<8x128xf32>
    %149 = math.tanh %143 : vector<8x128xf32>
    %150 = vector.extract_strided_slice %148 {offsets = [0, 0], sizes = [8, 32], strides = [1, 1]} : vector<8x128xf32> to vector<8x32xf32>
    %151 = vector.extract_strided_slice %148 {offsets = [0, 32], sizes = [8, 32], strides = [1, 1]} : vector<8x128xf32> to vector<8x32xf32>
    %152 = vector.extract_strided_slice %149 {offsets = [0, 64], sizes = [8, 32], strides = [1, 1]} : vector<8x128xf32> to vector<8x32xf32>
    %153 = vector.extract_strided_slice %148 {offsets = [0, 96], sizes = [8, 32], strides = [1, 1]} : vector<8x128xf32> to vector<8x32xf32>
    %154 = arith.mulf %151, %136 : vector<8x32xf32>
    %155 = arith.mulf %150, %152 : vector<8x32xf32>
    %156 = arith.addf %154, %155 : vector<8x32xf32>
    %157 = math.tanh %156 : vector<8x32xf32>
    %158 = arith.mulf %153, %157 : vector<8x32xf32>
    %c48 = arith.constant 48 : index
    %c0_31 = arith.constant 0 : index
    %159 = vector.load %arg12[%c48, %c0_31] : memref<56x32xf32, #tpu.memory_space<vmem>>, vector<8x32xf32>
    tpu.vector_store %arg12[%c48, %c0_31], %158 {strides = array<i32>} : memref<56x32xf32, #tpu.memory_space<vmem>>, vector<8x32xf32>,
    %160 = vector.extract_strided_slice %20 {offsets = [56, 0], sizes = [8, 128], strides = [1, 1]} : vector<64x128xf32> to vector<8x128xf32>
    %161 = arith.truncf %158 : vector<8x32xf32> to vector<8x32xbf16>
    %cst_32 = arith.constant dense<0.000000e+00> : vector<8x128xf32>
    %162 = tpu.matmul %161, %21, %cst_32 {dimension_numbers = #tpu.dot_dimension_numbers<[1], [0], [0], [1], [0, 0, 1, 1], [], []>} : vector<8x32xbf16>, vector<32x128xbf16>, vector<8x128xf32> -> vector<8x128xf32>
    %163 = arith.addf %160, %162 : vector<8x128xf32>
    %164 = arith.negf %163 : vector<8x128xf32>
    %165 = math.exp %164 : vector<8x128xf32>
    %cst_33 = arith.constant 1.000000e+00 : f32
    %166 = vector.broadcast %cst_33 : f32 to vector<8x128xf32>
    %167 = arith.addf %166, %165 : vector<8x128xf32>
    %168 = arith.divf %166, %167 : vector<8x128xf32>
    %169 = math.tanh %163 : vector<8x128xf32>
    %170 = vector.extract_strided_slice %168 {offsets = [0, 0], sizes = [8, 32], strides = [1, 1]} : vector<8x128xf32> to vector<8x32xf32>
    %171 = vector.extract_strided_slice %168 {offsets = [0, 32], sizes = [8, 32], strides = [1, 1]} : vector<8x128xf32> to vector<8x32xf32>
    %172 = vector.extract_strided_slice %169 {offsets = [0, 64], sizes = [8, 32], strides = [1, 1]} : vector<8x128xf32> to vector<8x32xf32>
    %173 = vector.extract_strided_slice %168 {offsets = [0, 96], sizes = [8, 32], strides = [1, 1]} : vector<8x128xf32> to vector<8x32xf32>
    %174 = arith.mulf %171, %156 : vector<8x32xf32>
    %175 = arith.mulf %170, %172 : vector<8x32xf32>
    %176 = arith.addf %174, %175 : vector<8x32xf32>
    %177 = math.tanh %176 : vector<8x32xf32>
    %178 = arith.mulf %173, %177 : vector<8x32xf32>
    %c0_34 = arith.constant 0 : index
    %c0_35 = arith.constant 0 : index
    %179 = vector.load %arg12[%c0_34, %c0_35] : memref<56x32xf32, #tpu.memory_space<vmem>>, vector<56x32xf32>
    %180 = arith.truncf %179 : vector<56x32xf32> to vector<56x32xbf16>
    %c0_36 = arith.constant 0 : index
    %c0_37 = arith.constant 0 : index
    %181 = vector.load %arg5[%c0_36, %c0_37] : memref<32x32xbf16, #tpu.memory_space<vmem>>, vector<32x32xbf16>
    %cst_38 = arith.constant dense<0.000000e+00> : vector<56x32xf32>
    %182 = tpu.matmul %180, %181, %cst_38 {dimension_numbers = #tpu.dot_dimension_numbers<[1], [0], [0], [1], [0, 0, 1, 1], [], []>} : vector<56x32xbf16>, vector<32x32xbf16>, vector<56x32xf32> -> vector<56x32xf32>
    %183 = arith.truncf %178 : vector<8x32xf32> to vector<8x32xbf16>
    %c0_39 = arith.constant 0 : index
    %c0_40 = arith.constant 0 : index
    %184 = vector.load %arg6[%c0_39, %c0_40] : memref<32x64xbf16, #tpu.memory_space<vmem>>, vector<32x64xbf16>
    %cst_41 = arith.constant dense<0.000000e+00> : vector<8x64xf32>
    %185 = tpu.matmul %183, %184, %cst_41 {dimension_numbers = #tpu.dot_dimension_numbers<[1], [0], [0], [1], [0, 0, 1, 1], [], []>} : vector<8x32xbf16>, vector<32x64xbf16>, vector<8x64xf32> -> vector<8x64xf32>
    %186 = vector.extract_strided_slice %185 {offsets = [0, 0], sizes = [8, 32], strides = [1, 1]} : vector<8x64xf32> to vector<8x32xf32>
    %187 = vector.extract_strided_slice %185 {offsets = [0, 32], sizes = [8, 32], strides = [1, 1]} : vector<8x64xf32> to vector<8x32xf32>
    %188 = vector.shape_cast %182 : vector<56x32xf32> to vector<7x8x32xf32>
    %189 = vector.shape_cast %186 : vector<8x32xf32> to vector<1x8x32xf32>
    %190 = vector.broadcast %189 : vector<1x8x32xf32> to vector<7x8x32xf32>
    %191 = arith.addf %188, %190 : vector<7x8x32xf32>
    %192 = math.tanh %191 : vector<7x8x32xf32>
    %193 = vector.shape_cast %192 : vector<7x8x32xf32> to vector<56x32xf32>
    %c0_42 = arith.constant 0 : index
    %c0_43 = arith.constant 0 : index
    %194 = vector.load %arg7[%c0_42, %c0_43] : memref<32x1xf32, #tpu.memory_space<vmem>>, vector<32x1xf32>
    %cst_44 = arith.constant dense<0.000000e+00> : vector<56x1xf32>
    %195 = tpu.matmul %193, %194, %cst_44 {dimension_numbers = #tpu.dot_dimension_numbers<[1], [0], [0], [1], [0, 0, 1, 1], [], []>} : vector<56x32xf32>, vector<32x1xf32>, vector<56x1xf32> -> vector<56x1xf32>
    %196 = vector.shape_cast %195 : vector<56x1xf32> to vector<7x8x1xf32>
    %cst_45 = arith.constant dense<0xFF800000> : vector<8x1xf32>
    %197 = vector.multi_reduction <maximumf>, %196, %cst_45 [0] : vector<7x8x1xf32> to vector<8x1xf32>
    %198 = vector.shape_cast %197 : vector<8x1xf32> to vector<1x8x1xf32>
    %199 = vector.broadcast %198 : vector<1x8x1xf32> to vector<7x8x1xf32>
    %200 = arith.subf %196, %199 : vector<7x8x1xf32>
    %201 = math.exp %200 : vector<7x8x1xf32>
    %cst_46 = arith.constant dense<0.000000e+00> : vector<8x1xf32>
    %202 = vector.multi_reduction <add>, %201, %cst_46 [0] : vector<7x8x1xf32> to vector<8x1xf32>
    %203 = vector.shape_cast %179 : vector<56x32xf32> to vector<7x8x32xf32>
    %204 = vector.broadcast %201 : vector<7x8x1xf32> to vector<7x8x32xf32>
    %205 = arith.mulf %203, %204 : vector<7x8x32xf32>
    %cst_47 = arith.constant dense<0.000000e+00> : vector<8x32xf32>
    %206 = vector.multi_reduction <add>, %205, %cst_47 [0] : vector<7x8x32xf32> to vector<8x32xf32>
    %207 = vector.broadcast %202 : vector<8x1xf32> to vector<8x32xf32>
    %208 = arith.divf %206, %207 : vector<8x32xf32>
    %209 = arith.truncf %208 : vector<8x32xf32> to vector<8x32xbf16>
    %c0_48 = arith.constant 0 : index
    %c0_49 = arith.constant 0 : index
    %210 = vector.load %arg8[%c0_48, %c0_49] : memref<32x32xbf16, #tpu.memory_space<vmem>>, vector<32x32xbf16>
    %cst_50 = arith.constant dense<0.000000e+00> : vector<8x32xf32>
    %211 = tpu.matmul %209, %210, %cst_50 {dimension_numbers = #tpu.dot_dimension_numbers<[1], [0], [0], [1], [0, 0, 1, 1], [], []>} : vector<8x32xbf16>, vector<32x32xbf16>, vector<8x32xf32> -> vector<8x32xf32>
    %212 = arith.addf %187, %211 : vector<8x32xf32>
    %213 = math.tanh %212 : vector<8x32xf32>
    %214 = arith.truncf %213 : vector<8x32xf32> to vector<8x32xbf16>
    %c0_51 = arith.constant 0 : index
    %c0_52 = arith.constant 0 : index
    %215 = vector.load %arg9[%c0_51, %c0_52] : memref<32x128xbf16, #tpu.memory_space<vmem>>, vector<32x128xbf16>
    %cst_53 = arith.constant dense<0.000000e+00> : vector<8x128xf32>
    %216 = tpu.matmul %214, %215, %cst_53 {dimension_numbers = #tpu.dot_dimension_numbers<[1], [0], [0], [1], [0, 0, 1, 1], [], []>} : vector<8x32xbf16>, vector<32x128xbf16>, vector<8x128xf32> -> vector<8x128xf32>
    %c0_54 = arith.constant 0 : index
    %c0_55 = arith.constant 0 : index
    %217 = vector.load %arg10[%c0_54, %c0_55] : memref<1x128xf32, #tpu.memory_space<vmem>>, vector<1x128xf32>
    %218 = vector.broadcast %217 : vector<1x128xf32> to vector<8x128xf32>
    %219 = arith.addf %216, %218 : vector<8x128xf32>
    %cst_56 = arith.constant dense<0xFF800000> : vector<8xf32>
    %220 = vector.multi_reduction <maximumf>, %219, %cst_56 [1] : vector<8x128xf32> to vector<8xf32>
    %221 = vector.shape_cast %220 : vector<8xf32> to vector<8x1xf32>
    %222 = vector.broadcast %221 : vector<8x1xf32> to vector<8x128xf32>
    %223 = arith.subf %219, %222 : vector<8x128xf32>
    %224 = math.exp %223 : vector<8x128xf32>
    %cst_57 = arith.constant dense<0.000000e+00> : vector<8xf32>
    %225 = vector.multi_reduction <add>, %224, %cst_57 [1] : vector<8x128xf32> to vector<8xf32>
    %226 = vector.shape_cast %225 : vector<8xf32> to vector<8x1xf32>
    %227 = math.log %226 : vector<8x1xf32>
    %228 = vector.broadcast %227 : vector<8x1xf32> to vector<8x128xf32>
    %229 = arith.subf %223, %228 : vector<8x128xf32>
    %c0_58 = arith.constant 0 : index
    %c0_59 = arith.constant 0 : index
    %230 = vector.load %arg11[%c0_58, %c0_59] : memref<8x128xf32, #tpu.memory_space<vmem>>, vector<8x128xf32>
    tpu.vector_store %arg11[%c0_58, %c0_59], %229 {strides = array<i32>} : memref<8x128xf32, #tpu.memory_space<vmem>>, vector<8x128xf32>,
    return
  }
}

</mosaic_0001>

<llo_original>
// kernel: forward.1
$region0: #{forward.1}
  #allocation0 [shape = 'u32[]', space=smem, size = 0x4, offset = 0x4, fixed_abs, tag = 'smem constant byte address 0x4 - core index']
  #allocation1 [shape = 'u32[72,128]{1,0:T(1,128)}', space=vmem, size = 0x9000, scoped, tag = 'internal scratch']
  #allocation2 [shape = 'f32[56,32]{1,0:T(8,128)}', space=vmem, size = 0x7000, scoped, tag = 'scratch operand']
  %s0 = inlined_call_operand.vmem [shape: s32[64,2], index: 0, kind: input, shape index: {}]
  %s1 = inlined_call_operand.vmem [shape: f32[32,16], index: 1, kind: input, shape index: {}]
  %s2 = inlined_call_operand.hbm [shape: bf16[16,128], index: 2, kind: input, shape index: {}]
  %s3 = inlined_call_operand.hbm [shape: bf16[32,128], index: 3, kind: input, shape index: {}]
  %s4 = inlined_call_operand.vmem [shape: f32[1,128], index: 4, kind: input, shape index: {}]
  %s5 = inlined_call_operand.hbm [shape: bf16[32,32], index: 5, kind: input, shape index: {}]
  %s6 = inlined_call_operand.hbm [shape: bf16[32,64], index: 6, kind: input, shape index: {}]
  %s7 = inlined_call_operand.vmem [shape: f32[32,1], index: 7, kind: input, shape index: {}]
  %s8 = inlined_call_operand.vmem [shape: bf16[32,32], index: 8, kind: input, shape index: {}]
  %s9 = inlined_call_operand.vmem [shape: bf16[32,128], index: 9, kind: input, shape index: {}]
  %s10 = inlined_call_operand.vmem [shape: f32[1,128], index: 10, kind: input, shape index: {}]
  %s11 = inlined_call_operand.vmem [shape: f32[8,128], index: 11, kind: output, shape index: {}]
  %s12 = sld [smem:[#allocation0]]
  $region70: #{forward.1} parent=0
    _
  %s14 = ssub.s32 1, %s12
  %s15 = scalar_select 0, %s14, %s12
  $region1: #{forward.1} parent=0
    #allocation3 [shape = 'u8[4096]{0}', space=vmem, size = 0x1000, scoped, tag = 'input window, operand 2, single buffered']
    #allocation4 [shape = 's32[1]{0}', space=sflag, size = 0x4, scoped, tag = 'scoped memory for forward.1']
    #allocation5 [shape = 'u8[8192]{0}', space=vmem, size = 0x2000, scoped, tag = 'input window, operand 3, single buffered']
    #allocation6 [shape = 's32[1]{0}', space=sflag, size = 0x4, scoped, tag = 'scoped memory for forward.1']
    #allocation7 [shape = 'u8[8192]{0}', space=vmem, size = 0x2000, scoped, tag = 'input window, operand 5, single buffered']
    #allocation8 [shape = 'u8[8192]{0}', space=vmem, size = 0x2000, scoped, tag = 'input window, operand 6, single buffered']
    #allocation9 [shape = 's32[1]{0}', space=sflag, size = 0x4, scoped, tag = 'scoped memory for forward.1']
    %16 = vsyncpa [#allocation4], 0
    %17 = vsyncpa [#allocation6], 0
    %18 = vsyncpa [#allocation9], 0
    // Predicated region
    $region2: #{forward.1} parent=1 // pred_check
      _
    $region3: #{forward.1} parent=1 // pred_check_branch
      %20 = sbr.rel (0) target = $region5
    $region4: #{forward.1} parent=1 // pred_region
      _
    $region5: #{forward.1} parent=1 // pred_fallthru
      _
    // Predicated region
    $region6: #{forward.1} parent=1 // pred_check
      _
    $region7: #{forward.1} parent=1 // pred_check_branch
      %22 = sbr.rel (0) target = $region9
    $region8: #{forward.1} parent=1 // pred_region
      _
    $region9: #{forward.1} parent=1 // pred_fallthru
      _
    // Predicated region
    $region10: #{forward.1} parent=1 // pred_check
      _
    $region11: #{forward.1} parent=1 // pred_check_branch
      %24 = sbr.rel (0) target = $region13
    $region12: #{forward.1} parent=1 // pred_region
      %26 = vsyncadd [#allocation4], 0
      %s27 = sshll.u32 %s2, 4
      %s28 = int_to_ptr.hbm [resolvable:$true] %s27
      %s29 = sshll.u32 [#allocation3], 4
      %s30 = int_to_ptr.vmem [resolvable:$true] %s29
      %35 = dma.hbm_to_vmem [thread:$0]  %s28, 128, %s30, [#allocation4], 64, 64, 4
    $region13: #{forward.1} parent=1 // pred_fallthru
      _
    // Predicated region
    $region14: #{forward.1} parent=1 // pred_check
      _
    $region15: #{forward.1} parent=1 // pred_check_branch
      %37 = sbr.rel (0) target = $region17
    $region16: #{forward.1} parent=1 // pred_region
      %39 = vsyncadd [#allocation6], 0
      %s40 = sshll.u32 %s3, 4
      %s41 = int_to_ptr.hbm [resolvable:$true] %s40
      %s42 = sshll.u32 [#allocation5], 4
      %s43 = int_to_ptr.vmem [resolvable:$true] %s42
      %48 = dma.hbm_to_vmem [thread:$0]  %s41, 256, %s43, [#allocation6], 64, 64, 4
    $region17: #{forward.1} parent=1 // pred_fallthru
      _
    // Predicated region
    $region18: #{forward.1} parent=1 // pred_check
      _
    $region19: #{forward.1} parent=1 // pred_check_branch
      %50 = sbr.rel (0) target = $region21
    $region20: #{forward.1} parent=1 // pred_region
      _
    $region21: #{forward.1} parent=1 // pred_fallthru
      _
    // Predicated region
    $region22: #{forward.1} parent=1 // pred_check
      _
    $region23: #{forward.1} parent=1 // pred_check_branch
      %52 = sbr.rel (0) target = $region25
    $region24: #{forward.1} parent=1 // pred_region
      %54 = vsyncadd [#allocation6], 0
      %s55 = sshll.u32 %s5, 4
      %s56 = int_to_ptr.hbm [resolvable:$true] %s55
      %s57 = sshll.u32 [#allocation7], 4
      %s58 = int_to_ptr.vmem [resolvable:$true] %s57
      %63 = dma.hbm_to_vmem [thread:$0]  %s56, 256, %s58, [#allocation6], 64, 64, 4
    $region25: #{forward.1} parent=1 // pred_fallthru
      _
    // Predicated region
    $region26: #{forward.1} parent=1 // pred_check
      _
    $region27: #{forward.1} parent=1 // pred_check_branch
      %65 = sbr.rel (0) target = $region29
    $region28: #{forward.1} parent=1 // pred_region
      %67 = vsyncadd [#allocation9], 0
      %s68 = sshll.u32 %s6, 4
      %s69 = int_to_ptr.hbm [resolvable:$true] %s68
      %s70 = sshll.u32 [#allocation8], 4
      %s71 = int_to_ptr.vmem [resolvable:$true] %s70
      %76 = dma.hbm_to_vmem [thread:$0]  %s69, 256, %s71, [#allocation9], 64, 64, 4
    $region29: #{forward.1} parent=1 // pred_fallthru
      _
    // Predicated region
    $region30: #{forward.1} parent=1 // pred_check
      _
    $region31: #{forward.1} parent=1 // pred_check_branch
      %78 = sbr.rel (0) target = $region33
    $region32: #{forward.1} parent=1 // pred_region
      _
    $region33: #{forward.1} parent=1 // pred_fallthru
      _
    // Predicated region
    $region34: #{forward.1} parent=1 // pred_check
      _
    $region35: #{forward.1} parent=1 // pred_check_branch
      %80 = sbr.rel (0) target = $region37
    $region36: #{forward.1} parent=1 // pred_region
      _
    $region37: #{forward.1} parent=1 // pred_fallthru
      _
    // Predicated region
    $region38: #{forward.1} parent=1 // pred_check
      _
    $region39: #{forward.1} parent=1 // pred_check_branch
      %82 = sbr.rel (0) target = $region41
    $region40: #{forward.1} parent=1 // pred_region
      _
    $region41: #{forward.1} parent=1 // pred_fallthru
      _
    // Predicated region
    $region42: #{forward.1} parent=1 // pred_check
      _
    $region43: #{forward.1} parent=1 // pred_check_branch
      %84 = sbr.rel (0) target = $region45
    $region44: #{forward.1} parent=1 // pred_region
      _
    $region45: #{forward.1} parent=1 // pred_fallthru
      _
    // Predicated region
    $region46: #{forward.1} parent=1 // pred_check
      _
    $region47: #{forward.1} parent=1 // pred_check_branch
      %86 = sbr.rel (0) target = $region49
    $region48: #{forward.1} parent=1 // pred_region
      %88 = dma.done [#allocation4], 128
    $region49: #{forward.1} parent=1 // pred_fallthru
      _
    // Predicated region
    $region50: #{forward.1} parent=1 // pred_check
      _
    $region51: #{forward.1} parent=1 // pred_check_branch
      %90 = sbr.rel (0) target = $region53
    $region52: #{forward.1} parent=1 // pred_region
      %92 = dma.done [#allocation6], 256
    $region53: #{forward.1} parent=1 // pred_fallthru
      _
    // Predicated region
    $region54: #{forward.1} parent=1 // pred_check
      _
    $region55: #{forward.1} parent=1 // pred_check_branch
      %94 = sbr.rel (0) target = $region57
    $region56: #{forward.1} parent=1 // pred_region
      %96 = dma.done [#allocation6], 256
    $region57: #{forward.1} parent=1 // pred_fallthru
      _
    // Predicated region
    $region58: #{forward.1} parent=1 // pred_check
      _
    $region59: #{forward.1} parent=1 // pred_check_branch
      %98 = sbr.rel (0) target = $region61
    $region60: #{forward.1} parent=1 // pred_region
      %100 = dma.done [#allocation9], 256
    $region61: #{forward.1} parent=1 // pred_fallthru
      _
    %v102 = vld [vmem:[%s0] sm:$0xff]
    %v103 = vld [vmem:[%s0 + $0x8] sm:$0xff]
    %v104 = vld [vmem:[%s0 + $0x10] sm:$0xff]
    %v105 = vld [vmem:[%s0 + $0x18] sm:$0xff]
    %v106 = vld [vmem:[%s0 + $0x20] sm:$0xff]
    %v107 = vld [vmem:[%s0 + $0x28] sm:$0xff]
    %v108 = vld [vmem:[%s0 + $0x30] sm:$0xff]
    %v109 = vld [vmem:[%s0 + $0x38] sm:$0xff]
    %v110 = vadd.s32 %v102, 12
    %v111 = vadd.s32 %v103, 12
    %v112 = vadd.s32 %v104, 12
    %v113 = vadd.s32 %v105, 12
    %v114 = vadd.s32 %v106, 12
    %v115 = vadd.s32 %v107, 12
    %v116 = vadd.s32 %v108, 12
    %v117 = vadd.s32 %v109, 12
    %v118 = vlaneseq
    %v119 = vand.u32 %v118, 127
    %120 = vset.pattern.permute.xlu0 0
    %121 = vperm.xlu0 %120, %v102
    %v122 = vpop.permute.xlu0 %121
    %123 = vset.pattern.permute.xlu0 0
    %124 = vperm.xlu0 %123, %v103
    %v125 = vpop.permute.xlu0 %124
    %126 = vset.pattern.permute.xlu0 0
    %127 = vperm.xlu0 %126, %v104
    %v128 = vpop.permute.xlu0 %127
    %129 = vset.pattern.permute.xlu0 0
    %130 = vperm.xlu0 %129, %v105
    %v131 = vpop.permute.xlu0 %130
    %132 = vset.pattern.permute.xlu0 0
    %133 = vperm.xlu0 %132, %v106
    %v134 = vpop.permute.xlu0 %133
    %135 = vset.pattern.permute.xlu0 0
    %136 = vperm.xlu0 %135, %v107
    %v137 = vpop.permute.xlu0 %136
    %138 = vset.pattern.permute.xlu0 0
    %139 = vperm.xlu0 %138, %v108
    %v140 = vpop.permute.xlu0 %139
    %141 = vset.pattern.permute.xlu0 0
    %142 = vperm.xlu0 %141, %v109
    %v143 = vpop.permute.xlu0 %142
    %vm144 = vcmp.eq.s32.totalorder %v119, %v122
    %vm145 = vcmp.eq.s32.totalorder %v119, %v125
    %vm146 = vcmp.eq.s32.totalorder %v119, %v128
    %vm147 = vcmp.eq.s32.totalorder %v119, %v131
    %vm148 = vcmp.eq.s32.totalorder %v119, %v134
    %vm149 = vcmp.eq.s32.totalorder %v119, %v137
    %vm150 = vcmp.eq.s32.totalorder %v119, %v140
    %vm151 = vcmp.eq.s32.totalorder %v119, %v143
    %152 = vset.pattern.permute.xlu0 1
    %153 = vperm.xlu0 %152, %v110
    %v154 = vpop.permute.xlu0 %153
    %155 = vset.pattern.permute.xlu0 1
    %156 = vperm.xlu0 %155, %v111
    %v157 = vpop.permute.xlu0 %156
    %158 = vset.pattern.permute.xlu0 1
    %159 = vperm.xlu0 %158, %v112
    %v160 = vpop.permute.xlu0 %159
    %161 = vset.pattern.permute.xlu0 1
    %162 = vperm.xlu0 %161, %v113
    %v163 = vpop.permute.xlu0 %162
    %164 = vset.pattern.permute.xlu0 1
    %165 = vperm.xlu0 %164, %v114
    %v166 = vpop.permute.xlu0 %165
    %167 = vset.pattern.permute.xlu0 1
    %168 = vperm.xlu0 %167, %v115
    %v169 = vpop.permute.xlu0 %168
    %170 = vset.pattern.permute.xlu0 1
    %171 = vperm.xlu0 %170, %v116
    %v172 = vpop.permute.xlu0 %171
    %173 = vset.pattern.permute.xlu0 1
    %174 = vperm.xlu0 %173, %v117
    %v175 = vpop.permute.xlu0 %174
    %vm176 = vcmp.eq.s32.totalorder %v119, %v154
    %vm177 = vcmp.eq.s32.totalorder %v119, %v157
    %vm178 = vcmp.eq.s32.totalorder %v119, %v160
    %vm179 = vcmp.eq.s32.totalorder %v119, %v163
    %vm180 = vcmp.eq.s32.totalorder %v119, %v166
    %vm181 = vcmp.eq.s32.totalorder %v119, %v169
    %vm182 = vcmp.eq.s32.totalorder %v119, %v172
    %vm183 = vcmp.eq.s32.totalorder %v119, %v175
    %vm184 = vmor %vm144, %vm176
    %vm185 = vmor %vm145, %vm177
    %vm186 = vmor %vm146, %vm178
    %vm187 = vmor %vm147, %vm179
    %vm188 = vmor %vm148, %vm180
    %vm189 = vmor %vm149, %vm181
    %vm190 = vmor %vm150, %vm182
    %vm191 = vmor %vm151, %vm183
    %v192 = vsel %vm184, 1, 0
    %v193 = vsel %vm185, 1, 0
    %v194 = vsel %vm186, 1, 0
    %v195 = vsel %vm187, 1, 0
    %v196 = vsel %vm188, 1, 0
    %v197 = vsel %vm189, 1, 0
    %v198 = vsel %vm190, 1, 0
    %v199 = vsel %vm191, 1, 0
    %v200 = vcvt.s32.f32 %v192
    %v201 = vcvt.s32.f32 %v193
    %v202 = vcvt.s32.f32 %v194
    %v203 = vcvt.s32.f32 %v195
    %v204 = vcvt.s32.f32 %v196
    %v205 = vcvt.s32.f32 %v197
    %v206 = vcvt.s32.f32 %v198
    %v207 = vcvt.s32.f32 %v199
    %v208 = vld [vmem:[%s1] sm:$0xff]
    %v209 = vld [vmem:[%s1 + $0x8] sm:$0xff]
    %v210 = vld [vmem:[%s1 + $0x10] sm:$0xff]
    %v211 = vld [vmem:[%s1 + $0x18] sm:$0xff]
    %vm212 = vcmask 261120
    %v214 = vsel %vm212, %v200, 0
    %v217 = vsel %vm212, %v201, 0
    %v220 = vsel %vm212, %v202, 0
    %v223 = vsel %vm212, %v203, 0
    %v226 = vsel %vm212, %v204, 0
    %v229 = vsel %vm212, %v205, 0
    %v232 = vsel %vm212, %v206, 0
    %v235 = vsel %vm212, %v207, 0
    %237 = vmatpush.msra.mxu0 0.0
    %238 = vmatpush.msra.mxu0 0.0
    %239 = vmatpush.msra.mxu0 0.0
    %240 = vmatpush.msra.mxu0 0.0
    %241 = vmatpush.msra.mxu0 0.0
    %242 = vmatpush.msra.mxu0 0.0
    %243 = vmatpush.msra.mxu0 0.0
    %244 = vmatpush.msra.mxu0 0.0
    %245 = vmatpush.msra.mxu0 0.0
    %246 = vmatpush.msra.mxu0 0.0
    %247 = vmatpush.msra.mxu0 0.0
    %248 = vmatpush.msra.mxu0 0.0
    %249 = vmatpush.msra.mxu0 %v211
    %250 = vmatpush.msra.mxu0 %v210
    %251 = vmatpush.msra.mxu0 %v209
    %252 = vmatpush.msra.mxu0 %v208
    %253 = vmatmul.f32.gmra.mxu0 %v214
    %v254 = vpop.f32.mrf.mxu0
    %v255 = vadd.f32 0.0, %v254
    %256 = vmatmul.f32.gmra.mxu0 %v217
    %v257 = vpop.f32.mrf.mxu0
    %v258 = vadd.f32 0.0, %v257
    %259 = vmatmul.f32.gmra.mxu0 %v220
    %v260 = vpop.f32.mrf.mxu0
    %v261 = vadd.f32 0.0, %v260
    %262 = vmatmul.f32.gmra.mxu0 %v223
    %v263 = vpop.f32.mrf.mxu0
    %v264 = vadd.f32 0.0, %v263
    %265 = vmatmul.f32.gmra.mxu0 %v226
    %v266 = vpop.f32.mrf.mxu0
    %v267 = vadd.f32 0.0, %v266
    %268 = vmatmul.f32.gmra.mxu0 %v229
    %v269 = vpop.f32.mrf.mxu0
    %v270 = vadd.f32 0.0, %v269
    %271 = vmatmul.f32.gmra.mxu0 %v232
    %v272 = vpop.f32.mrf.mxu0
    %v273 = vadd.f32 0.0, %v272
    %274 = vmatmul.f32.gmra.mxu0 %v235
    %v275 = vpop.f32.mrf.mxu0
    %v276 = vadd.f32 0.0, %v275
    %277 = vdwg.mxu0
    %v278 = vpack.c.bf16 %v258, %v255
    %v279 = vpack.c.bf16 %v264, %v261
    %v280 = vpack.c.bf16 %v270, %v267
    %v281 = vpack.c.bf16 %v276, %v273
    %v282 = vld [vmem:[#allocation3] sm:$0xf]
    %v283 = vld [vmem:[#allocation3 + $0x4] sm:$0xf]
    %v284 = vld [vmem:[%s4] sm:$0x1]
    %v286 = vperm.slane %v284, 0
    %v290 = vunpack.c.l.b16 %v282
    %v291 = vunpack.c.l.b16 %v283
    %v292 = vpack.c.b16 %v291, %v290
    %vm294 = vcmask 130048
    %v296 = vsel %vm294, %v278, 0
    %v299 = vsel %vm294, %v279, 0
    %v302 = vsel %vm294, %v280, 0
    %v305 = vsel %vm294, %v281, 0
    %307 = vmatpush.bf16.msra.mxu0 0
    %308 = vmatpush.bf16.msra.mxu0 0
    %309 = vmatpush.bf16.msra.mxu0 0
    %310 = vmatpush.bf16.msra.mxu0 0
    %311 = vmatpush.bf16.msra.mxu0 0
    %312 = vmatpush.bf16.msra.mxu0 0
    %313 = vmatpush.bf16.msra.mxu0 0
    %314 = vmatpush.bf16.msra.mxu0 %v292
    %315 = vmatmul.bf16.gmra.mxu0 %v296
    %v316 = vpop.f32.mrf.mxu0
    %v317 = vadd.f32 %v286, %v316
    %v318 = vpop.f32.mrf.mxu0
    %v319 = vadd.f32 %v286, %v318
    %320 = vmatmul.bf16.gmra.mxu0 %v299
    %v321 = vpop.f32.mrf.mxu0
    %v322 = vadd.f32 %v286, %v321
    %v323 = vpop.f32.mrf.mxu0
    %v324 = vadd.f32 %v286, %v323
    %325 = vmatmul.bf16.gmra.mxu0 %v302
    %v326 = vpop.f32.mrf.mxu0
    %v327 = vadd.f32 %v286, %v326
    %v328 = vpop.f32.mrf.mxu0
    %v329 = vadd.f32 %v286, %v328
    %330 = vmatmul.bf16.gmra.mxu0 %v305
    %v331 = vpop.f32.mrf.mxu0
    %v332 = vadd.f32 %v286, %v331
    %v333 = vpop.f32.mrf.mxu0
    %v334 = vadd.f32 %v286, %v333
    %335 = vdwg.mxu0
    %v336 = vld [vmem:[#allocation5] sm:$0xf]
    %v337 = vld [vmem:[#allocation5 + $0x4] sm:$0xf]
    %v338 = vld [vmem:[#allocation5 + $0x8] sm:$0xf]
    %v339 = vld [vmem:[#allocation5 + $0xc] sm:$0xf]
    %v340 = vxor.u32 %v317, 2147483648
    %v341 = vmul.f32 %v340, 1.442695
    %v342 = vpow.pop %v341
    %v343 = vadd.f32 %v342, 1.0
    %v344 = vrcp.pop %v343
    %v345 = vmul.f32 %v343, %v344
    %v346 = vsub.f32 1.0, %v345
    %v347 = vmul.f32 %v344, %v346
    %v348 = vadd.f32 %v344, %v347
    %vm349 = vweird.f32 %v343
    %vm350 = vweird.f32 %v344
    %vm351 = vmor %vm349, %vm350
    %v352 = vsel %vm351, %v344, %v348
    %v353 = vand.u32 2147483647, %v343
    %vm354 = vcmp.eq.f32.partialorder %v353, 8.507059e+37
    %v355 = vand.u32 %v343, 2147483648
    %v356 = vor.u32 1.1754944e-38, %v355
    %v357 = vsel %vm354, %v356, %v352
    %v358 = vmul.f32 1.0, %v357
    %v359 = vtanh.pop %v317
    %v360 = vmul.f32 %v358, 0.0
    %362 = vrot.lane.b32.xlu0 %v359, 64
    %v363 = vpop.permute.xlu0 %362
    %v365 = vmul.f32 %v358, %v363
    %367 = vrot.lane.b32.xlu0 %v365, 32
    %v368 = vpop.permute.xlu0 %367
    %v370 = vadd.f32 %v360, %v368
    %v371 = vtanh.pop %v370
    %373 = vrot.lane.b32.xlu0 %v371, 64
    %v374 = vpop.permute.xlu0 %373
    %v376 = vmul.f32 %v358, %v374
    %378 = vrot.lane.b32.xlu0 %v376, 32
    %v379 = vpop.permute.xlu0 %378
    %381 = vst.msk [vmem:[#allocation2] sm:$0xff] %vm212, %v379
    %v382 = vpack.c.bf16 %v376, %v376
    %384 = vrot.lane.b32.xlu0 %v382, 32
    %v385 = vpop.permute.xlu0 %384
    %v390 = vunpack.c.l.b16 %v336
    %v391 = vunpack.c.l.b16 %v337
    %v392 = vunpack.c.l.b16 %v338
    %v393 = vunpack.c.l.b16 %v339
    %v394 = vpack.c.b16 %v391, %v390
    %v395 = vpack.c.b16 %v393, %v392
    %v399 = vsel %vm212, %v385, 0
    %401 = vmatpush.bf16.msra.mxu0 0
    %402 = vmatpush.bf16.msra.mxu0 0
    %403 = vmatpush.bf16.msra.mxu0 0
    %404 = vmatpush.bf16.msra.mxu0 0
    %405 = vmatpush.bf16.msra.mxu0 0
    %406 = vmatpush.bf16.msra.mxu0 0
    %407 = vmatpush.bf16.msra.mxu0 %v395
    %408 = vmatpush.bf16.msra.mxu0 %v394
    %409 = vmatmul.bf16.gmra.mxu0 %v399
    %v410 = vpop.f32.mrf.mxu0
    %v411 = vadd.f32 0.0, %v410
    %v412 = vpop.f32.mrf.mxu0
    %413 = vdwg.mxu0
    %v414 = vadd.f32 %v319, %v411
    %v415 = vxor.u32 %v414, 2147483648
    %v416 = vmul.f32 %v415, 1.442695
    %v417 = vpow.pop %v416
    %v418 = vadd.f32 %v417, 1.0
    %v419 = vrcp.pop %v418
    %v420 = vmul.f32 %v418, %v419
    %v421 = vsub.f32 1.0, %v420
    %v422 = vmul.f32 %v419, %v421
    %v423 = vadd.f32 %v419, %v422
    %vm424 = vweird.f32 %v418
    %vm425 = vweird.f32 %v419
    %vm426 = vmor %vm424, %vm425
    %v427 = vsel %vm426, %v419, %v423
    %v428 = vand.u32 2147483647, %v418
    %vm429 = vcmp.eq.f32.partialorder %v428, 8.507059e+37
    %v430 = vand.u32 %v418, 2147483648
    %v431 = vor.u32 1.1754944e-38, %v430
    %v432 = vsel %vm429, %v431, %v427
    %v433 = vmul.f32 1.0, %v432
    %v434 = vtanh.pop %v414
    %v435 = vmul.f32 %v433, %v370
    %437 = vrot.lane.b32.xlu0 %v434, 64
    %v438 = vpop.permute.xlu0 %437
    %v440 = vmul.f32 %v433, %v438
    %442 = vrot.lane.b32.xlu0 %v440, 32
    %v443 = vpop.permute.xlu0 %442
    %v445 = vadd.f32 %v435, %v443
    %v446 = vtanh.pop %v445
    %448 = vrot.lane.b32.xlu0 %v446, 64
    %v449 = vpop.permute.xlu0 %448
    %v451 = vmul.f32 %v433, %v449
    %453 = vrot.lane.b32.xlu0 %v451, 32
    %v454 = vpop.permute.xlu0 %453
    %456 = vst.msk [vmem:[#allocation2 + $0x8] sm:$0xff] %vm212, %v454
    %v457 = vpack.c.bf16 %v451, %v451
    %459 = vrot.lane.b32.xlu0 %v457, 32
    %v460 = vpop.permute.xlu0 %459
    %v462 = vsel %vm212, %v460, 0
    %464 = vmatpush.bf16.msra.mxu0 0
    %465 = vmatpush.bf16.msra.mxu0 0
    %466 = vmatpush.bf16.msra.mxu0 0
    %467 = vmatpush.bf16.msra.mxu0 0
    %468 = vmatpush.bf16.msra.mxu0 0
    %469 = vmatpush.bf16.msra.mxu0 0
    %470 = vmatpush.bf16.msra.mxu0 %v395
    %471 = vmatpush.bf16.msra.mxu0 %v394
    %472 = vmatmul.bf16.gmra.mxu0 %v462
    %v473 = vpop.f32.mrf.mxu0
    %v474 = vadd.f32 0.0, %v473
    %v475 = vpop.f32.mrf.mxu0
    %476 = vdwg.mxu0
    %v477 = vadd.f32 %v322, %v474
    %v478 = vxor.u32 %v477, 2147483648
    %v479 = vmul.f32 %v478, 1.442695
    %v480 = vpow.pop %v479
    %v481 = vadd.f32 %v480, 1.0
    %v482 = vrcp.pop %v481
    %v483 = vmul.f32 %v481, %v482
    %v484 = vsub.f32 1.0, %v483
    %v485 = vmul.f32 %v482, %v484
    %v486 = vadd.f32 %v482, %v485
    %vm487 = vweird.f32 %v481
    %vm488 = vweird.f32 %v482
    %vm489 = vmor %vm487, %vm488
    %v490 = vsel %vm489, %v482, %v486
    %v491 = vand.u32 2147483647, %v481
    %vm492 = vcmp.eq.f32.partialorder %v491, 8.507059e+37
    %v493 = vand.u32 %v481, 2147483648
    %v494 = vor.u32 1.1754944e-38, %v493
    %v495 = vsel %vm492, %v494, %v490
    %v496 = vmul.f32 1.0, %v495
    %v497 = vtanh.pop %v477
    %v498 = vmul.f32 %v496, %v445
    %500 = vrot.lane.b32.xlu0 %v497, 64
    %v501 = vpop.permute.xlu0 %500
    %v503 = vmul.f32 %v496, %v501
    %505 = vrot.lane.b32.xlu0 %v503, 32
    %v506 = vpop.permute.xlu0 %505
    %v508 = vadd.f32 %v498, %v506
    %v509 = vtanh.pop %v508
    %511 = vrot.lane.b32.xlu0 %v509, 64
    %v512 = vpop.permute.xlu0 %511
    %v514 = vmul.f32 %v496, %v512
    %516 = vrot.lane.b32.xlu0 %v514, 32
    %v517 = vpop.permute.xlu0 %516
    %519 = vst.msk [vmem:[#allocation2 + $0x10] sm:$0xff] %vm212, %v517
    %v520 = vpack.c.bf16 %v514, %v514
    %522 = vrot.lane.b32.xlu0 %v520, 32
    %v523 = vpop.permute.xlu0 %522
    %v525 = vsel %vm212, %v523, 0
    %527 = vmatpush.bf16.msra.mxu0 0
    %528 = vmatpush.bf16.msra.mxu0 0
    %529 = vmatpush.bf16.msra.mxu0 0
    %530 = vmatpush.bf16.msra.mxu0 0
    %531 = vmatpush.bf16.msra.mxu0 0
    %532 = vmatpush.bf16.msra.mxu0 0
    %533 = vmatpush.bf16.msra.mxu0 %v395
    %534 = vmatpush.bf16.msra.mxu0 %v394
    %535 = vmatmul.bf16.gmra.mxu0 %v525
    %v536 = vpop.f32.mrf.mxu0
    %v537 = vadd.f32 0.0, %v536
    %v538 = vpop.f32.mrf.mxu0
    %539 = vdwg.mxu0
    %v540 = vadd.f32 %v324, %v537
    %v541 = vxor.u32 %v540, 2147483648
    %v542 = vmul.f32 %v541, 1.442695
    %v543 = vpow.pop %v542
    %v544 = vadd.f32 %v543, 1.0
    %v545 = vrcp.pop %v544
    %v546 = vmul.f32 %v544, %v545
    %v547 = vsub.f32 1.0, %v546
    %v548 = vmul.f32 %v545, %v547
    %v549 = vadd.f32 %v545, %v548
    %vm550 = vweird.f32 %v544
    %vm551 = vweird.f32 %v545
    %vm552 = vmor %vm550, %vm551
    %v553 = vsel %vm552, %v545, %v549
    %v554 = vand.u32 2147483647, %v544
    %vm555 = vcmp.eq.f32.partialorder %v554, 8.507059e+37
    %v556 = vand.u32 %v544, 2147483648
    %v557 = vor.u32 1.1754944e-38, %v556
    %v558 = vsel %vm555, %v557, %v553
    %v559 = vmul.f32 1.0, %v558
    %v560 = vtanh.pop %v540
    %v561 = vmul.f32 %v559, %v508
    %563 = vrot.lane.b32.xlu0 %v560, 64
    %v564 = vpop.permute.xlu0 %563
    %v566 = vmul.f32 %v559, %v564
    %568 = vrot.lane.b32.xlu0 %v566, 32
    %v569 = vpop.permute.xlu0 %568
    %v571 = vadd.f32 %v561, %v569
    %v572 = vtanh.pop %v571
    %574 = vrot.lane.b32.xlu0 %v572, 64
    %v575 = vpop.permute.xlu0 %574
    %v577 = vmul.f32 %v559, %v575
    %579 = vrot.lane.b32.xlu0 %v577, 32
    %v580 = vpop.permute.xlu0 %579
    %582 = vst.msk [vmem:[#allocation2 + $0x18] sm:$0xff] %vm212, %v580
    %v583 = vpack.c.bf16 %v577, %v577
    %585 = vrot.lane.b32.xlu0 %v583, 32
    %v586 = vpop.permute.xlu0 %585
    %v588 = vsel %vm212, %v586, 0
    %590 = vmatpush.bf16.msra.mxu0 0
    %591 = vmatpush.bf16.msra.mxu0 0
    %592 = vmatpush.bf16.msra.mxu0 0
    %593 = vmatpush.bf16.msra.mxu0 0
    %594 = vmatpush.bf16.msra.mxu0 0
    %595 = vmatpush.bf16.msra.mxu0 0
    %596 = vmatpush.bf16.msra.mxu0 %v395
    %597 = vmatpush.bf16.msra.mxu0 %v394
    %598 = vmatmul.bf16.gmra.mxu0 %v588
    %v599 = vpop.f32.mrf.mxu0
    %v600 = vadd.f32 0.0, %v599
    %v601 = vpop.f32.mrf.mxu0
    %602 = vdwg.mxu0
    %v603 = vadd.f32 %v327, %v600
    %v604 = vxor.u32 %v603, 2147483648
    %v605 = vmul.f32 %v604, 1.442695
    %v606 = vpow.pop %v605
    %v607 = vadd.f32 %v606, 1.0
    %v608 = vrcp.pop %v607
    %v609 = vmul.f32 %v607, %v608
    %v610 = vsub.f32 1.0, %v609
    %v611 = vmul.f32 %v608, %v610
    %v612 = vadd.f32 %v608, %v611
    %vm613 = vweird.f32 %v607
    %vm614 = vweird.f32 %v608
    %vm615 = vmor %vm613, %vm614
    %v616 = vsel %vm615, %v608, %v612
    %v617 = vand.u32 2147483647, %v607
    %vm618 = vcmp.eq.f32.partialorder %v617, 8.507059e+37
    %v619 = vand.u32 %v607, 2147483648
    %v620 = vor.u32 1.1754944e-38, %v619
    %v621 = vsel %vm618, %v620, %v616
    %v622 = vmul.f32 1.0, %v621
    %v623 = vtanh.pop %v603
    %v624 = vmul.f32 %v622, %v571
    %626 = vrot.lane.b32.xlu0 %v623, 64
    %v627 = vpop.permute.xlu0 %626
    %v629 = vmul.f32 %v622, %v627
    %631 = vrot.lane.b32.xlu0 %v629, 32
    %v632 = vpop.permute.xlu0 %631
    %v634 = vadd.f32 %v624, %v632
    %v635 = vtanh.pop %v634
    %637 = vrot.lane.b32.xlu0 %v635, 64
    %v638 = vpop.permute.xlu0 %637
    %v640 = vmul.f32 %v622, %v638
    %642 = vrot.lane.b32.xlu0 %v640, 32
    %v643 = vpop.permute.xlu0 %642
    %645 = vst.msk [vmem:[#allocation2 + $0x20] sm:$0xff] %vm212, %v643
    %v646 = vpack.c.bf16 %v640, %v640
    %648 = vrot.lane.b32.xlu0 %v646, 32
    %v649 = vpop.permute.xlu0 %648
    %v651 = vsel %vm212, %v649, 0
    %653 = vmatpush.bf16.msra.mxu0 0
    %654 = vmatpush.bf16.msra.mxu0 0
    %655 = vmatpush.bf16.msra.mxu0 0
    %656 = vmatpush.bf16.msra.mxu0 0
    %657 = vmatpush.bf16.msra.mxu0 0
    %658 = vmatpush.bf16.msra.mxu0 0
    %659 = vmatpush.bf16.msra.mxu0 %v395
    %660 = vmatpush.bf16.msra.mxu0 %v394
    %661 = vmatmul.bf16.gmra.mxu0 %v651
    %v662 = vpop.f32.mrf.mxu0
    %v663 = vadd.f32 0.0, %v662
    %v664 = vpop.f32.mrf.mxu0
    %665 = vdwg.mxu0
    %v666 = vadd.f32 %v329, %v663
    %v667 = vxor.u32 %v666, 2147483648
    %v668 = vmul.f32 %v667, 1.442695
    %v669 = vpow.pop %v668
    %v670 = vadd.f32 %v669, 1.0
    %v671 = vrcp.pop %v670
    %v672 = vmul.f32 %v670, %v671
    %v673 = vsub.f32 1.0, %v672
    %v674 = vmul.f32 %v671, %v673
    %v675 = vadd.f32 %v671, %v674
    %vm676 = vweird.f32 %v670
    %vm677 = vweird.f32 %v671
    %vm678 = vmor %vm676, %vm677
    %v679 = vsel %vm678, %v671, %v675
    %v680 = vand.u32 2147483647, %v670
    %vm681 = vcmp.eq.f32.partialorder %v680, 8.507059e+37
    %v682 = vand.u32 %v670, 2147483648
    %v683 = vor.u32 1.1754944e-38, %v682
    %v684 = vsel %vm681, %v683, %v679
    %v685 = vmul.f32 1.0, %v684
    %v686 = vtanh.pop %v666
    %v687 = vmul.f32 %v685, %v634
    %689 = vrot.lane.b32.xlu0 %v686, 64
    %v690 = vpop.permute.xlu0 %689
    %v692 = vmul.f32 %v685, %v690
    %694 = vrot.lane.b32.xlu0 %v692, 32
    %v695 = vpop.permute.xlu0 %694
    %v697 = vadd.f32 %v687, %v695
    %v698 = vtanh.pop %v697
    %700 = vrot.lane.b32.xlu0 %v698, 64
    %v701 = vpop.permute.xlu0 %700
    %v703 = vmul.f32 %v685, %v701
    %705 = vrot.lane.b32.xlu0 %v703, 32
    %v706 = vpop.permute.xlu0 %705
    %708 = vst.msk [vmem:[#allocation2 + $0x28] sm:$0xff] %vm212, %v706
    %v709 = vpack.c.bf16 %v703, %v703
    %711 = vrot.lane.b32.xlu0 %v709, 32
    %v712 = vpop.permute.xlu0 %711
    %v714 = vsel %vm212, %v712, 0
    %716 = vmatpush.bf16.msra.mxu0 0
    %717 = vmatpush.bf16.msra.mxu0 0
    %718 = vmatpush.bf16.msra.mxu0 0
    %719 = vmatpush.bf16.msra.mxu0 0
    %720 = vmatpush.bf16.msra.mxu0 0
    %721 = vmatpush.bf16.msra.mxu0 0
    %722 = vmatpush.bf16.msra.mxu0 %v395
    %723 = vmatpush.bf16.msra.mxu0 %v394
    %724 = vmatmul.bf16.gmra.mxu0 %v714
    %v725 = vpop.f32.mrf.mxu0
    %v726 = vadd.f32 0.0, %v725
    %v727 = vpop.f32.mrf.mxu0
    %728 = vdwg.mxu0
    %v729 = vadd.f32 %v332, %v726
    %v730 = vxor.u32 %v729, 2147483648
    %v731 = vmul.f32 %v730, 1.442695
    %v732 = vpow.pop %v731
    %v733 = vadd.f32 %v732, 1.0
    %v734 = vrcp.pop %v733
    %v735 = vmul.f32 %v733, %v734
    %v736 = vsub.f32 1.0, %v735
    %v737 = vmul.f32 %v734, %v736
    %v738 = vadd.f32 %v734, %v737
    %vm739 = vweird.f32 %v733
    %vm740 = vweird.f32 %v734
    %vm741 = vmor %vm739, %vm740
    %v742 = vsel %vm741, %v734, %v738
    %v743 = vand.u32 2147483647, %v733
    %vm744 = vcmp.eq.f32.partialorder %v743, 8.507059e+37
    %v745 = vand.u32 %v733, 2147483648
    %v746 = vor.u32 1.1754944e-38, %v745
    %v747 = vsel %vm744, %v746, %v742
    %v748 = vmul.f32 1.0, %v747
    %v749 = vtanh.pop %v729
    %v750 = vmul.f32 %v748, %v697
    %752 = vrot.lane.b32.xlu0 %v749, 64
    %v753 = vpop.permute.xlu0 %752
    %v755 = vmul.f32 %v748, %v753
    %757 = vrot.lane.b32.xlu0 %v755, 32
    %v758 = vpop.permute.xlu0 %757
    %v760 = vadd.f32 %v750, %v758
    %v761 = vtanh.pop %v760
    %763 = vrot.lane.b32.xlu0 %v761, 64
    %v764 = vpop.permute.xlu0 %763
    %v766 = vmul.f32 %v748, %v764
    %768 = vrot.lane.b32.xlu0 %v766, 32
    %v769 = vpop.permute.xlu0 %768
    %771 = vst.msk [vmem:[#allocation2 + $0x30] sm:$0xff] %vm212, %v769
    %v772 = vpack.c.bf16 %v766, %v766
    %774 = vrot.lane.b32.xlu0 %v772, 32
    %v775 = vpop.permute.xlu0 %774
    %v777 = vsel %vm212, %v775, 0
    %779 = vmatpush.bf16.msra.mxu0 0
    %780 = vmatpush.bf16.msra.mxu0 0
    %781 = vmatpush.bf16.msra.mxu0 0
    %782 = vmatpush.bf16.msra.mxu0 0
    %783 = vmatpush.bf16.msra.mxu0 0
    %784 = vmatpush.bf16.msra.mxu0 0
    %785 = vmatpush.bf16.msra.mxu0 %v395
    %786 = vmatpush.bf16.msra.mxu0 %v394
    %787 = vmatmul.bf16.gmra.mxu0 %v777
    %v788 = vpop.f32.mrf.mxu0
    %v789 = vadd.f32 0.0, %v788
    %v790 = vpop.f32.mrf.mxu0
    %791 = vdwg.mxu0
    %v792 = vadd.f32 %v334, %v789
    %v793 = vxor.u32 %v792, 2147483648
    %v794 = vmul.f32 %v793, 1.442695
    %v795 = vpow.pop %v794
    %v796 = vadd.f32 %v795, 1.0
    %v797 = vrcp.pop %v796
    %v798 = vmul.f32 %v796, %v797
    %v799 = vsub.f32 1.0, %v798
    %v800 = vmul.f32 %v797, %v799
    %v801 = vadd.f32 %v797, %v800
    %vm802 = vweird.f32 %v796
    %vm803 = vweird.f32 %v797
    %vm804 = vmor %vm802, %vm803
    %v805 = vsel %vm804, %v797, %v801
    %v806 = vand.u32 2147483647, %v796
    %vm807 = vcmp.eq.f32.partialorder %v806, 8.507059e+37
    %v808 = vand.u32 %v796, 2147483648
    %v809 = vor.u32 1.1754944e-38, %v808
    %v810 = vsel %vm807, %v809, %v805
    %v811 = vmul.f32 1.0, %v810
    %v812 = vtanh.pop %v792
    %v813 = vmul.f32 %v811, %v760
    %815 = vrot.lane.b32.xlu0 %v812, 64
    %v816 = vpop.permute.xlu0 %815
    %v818 = vmul.f32 %v811, %v816
    %820 = vrot.lane.b32.xlu0 %v818, 32
    %v821 = vpop.permute.xlu0 %820
    %v823 = vadd.f32 %v813, %v821
    %v824 = vtanh.pop %v823
    %826 = vrot.lane.b32.xlu0 %v824, 64
    %v827 = vpop.permute.xlu0 %826
    %v829 = vmul.f32 %v811, %v827
    %v830 = vld [vmem:[#allocation2] sm:$0xff]
    %v831 = vld [vmem:[#allocation2 + $0x8] sm:$0xff]
    %v832 = vld [vmem:[#allocation2 + $0x10] sm:$0xff]
    %v833 = vld [vmem:[#allocation2 + $0x18] sm:$0xff]
    %v834 = vld [vmem:[#allocation2 + $0x20] sm:$0xff]
    %v835 = vld [vmem:[#allocation2 + $0x28] sm:$0xff]
    %v836 = vld [vmem:[#allocation2 + $0x30] sm:$0xff]
    %v837 = vpack.c.bf16 %v831, %v830
    %v838 = vpack.c.bf16 %v833, %v832
    %v839 = vpack.c.bf16 %v835, %v834
    %v840 = vpack.c.bf16 %v836, %v836
    %v841 = vld [vmem:[#allocation7] sm:$0xf]
    %v842 = vld [vmem:[#allocation7 + $0x4] sm:$0xf]
    %v843 = vld [vmem:[#allocation7 + $0x8] sm:$0xf]
    %v844 = vld [vmem:[#allocation7 + $0xc] sm:$0xf]
    %v849 = vunpack.c.l.b16 %v841
    %v850 = vunpack.c.l.b16 %v842
    %v851 = vunpack.c.l.b16 %v843
    %v852 = vunpack.c.l.b16 %v844
    %v853 = vpack.c.b16 %v850, %v849
    %v854 = vpack.c.b16 %v852, %v851
    %v858 = vsel %vm212, %v837, 0
    %v861 = vsel %vm212, %v838, 0
    %v864 = vsel %vm212, %v839, 0
    %v867 = vsel %vm212, %v840, 0
    %869 = vmatpush.bf16.msra.mxu0 0
    %870 = vmatpush.bf16.msra.mxu0 0
    %871 = vmatpush.bf16.msra.mxu0 0
    %872 = vmatpush.bf16.msra.mxu0 0
    %873 = vmatpush.bf16.msra.mxu0 0
    %874 = vmatpush.bf16.msra.mxu0 0
    %875 = vmatpush.bf16.msra.mxu0 %v854
    %876 = vmatpush.bf16.msra.mxu0 %v853
    %877 = vmatmul.bf16.gmra.mxu0 %v858
    %v878 = vpop.f32.mrf.mxu0
    %v879 = vadd.f32 0.0, %v878
    %v880 = vpop.f32.mrf.mxu0
    %v881 = vadd.f32 0.0, %v880
    %882 = vmatmul.bf16.gmra.mxu0 %v861
    %v883 = vpop.f32.mrf.mxu0
    %v884 = vadd.f32 0.0, %v883
    %v885 = vpop.f32.mrf.mxu0
    %v886 = vadd.f32 0.0, %v885
    %887 = vmatmul.bf16.gmra.mxu0 %v864
    %v888 = vpop.f32.mrf.mxu0
    %v889 = vadd.f32 0.0, %v888
    %v890 = vpop.f32.mrf.mxu0
    %v891 = vadd.f32 0.0, %v890
    %892 = vmatmul.bf16.gmra.mxu0 %v867
    %v893 = vpop.f32.mrf.mxu0
    %v894 = vadd.f32 0.0, %v893
    %v895 = vpop.f32.mrf.mxu0
    %896 = vdwg.mxu0
    %v897 = vpack.c.bf16 %v829, %v829
    %v898 = vld [vmem:[#allocation8] sm:$0xf]
    %v899 = vld [vmem:[#allocation8 + $0x4] sm:$0xf]
    %v900 = vld [vmem:[#allocation8 + $0x8] sm:$0xf]
    %v901 = vld [vmem:[#allocation8 + $0xc] sm:$0xf]
    %903 = vrot.lane.b32.xlu0 %v897, 32
    %v904 = vpop.permute.xlu0 %903
    %v909 = vunpack.c.l.b16 %v898
    %v910 = vunpack.c.l.b16 %v899
    %v911 = vunpack.c.l.b16 %v900
    %v912 = vunpack.c.l.b16 %v901
    %v913 = vpack.c.b16 %v910, %v909
    %v914 = vpack.c.b16 %v912, %v911
    %v918 = vsel %vm212, %v904, 0
    %920 = vmatpush.bf16.msra.mxu0 0
    %921 = vmatpush.bf16.msra.mxu0 0
    %922 = vmatpush.bf16.msra.mxu0 0
    %923 = vmatpush.bf16.msra.mxu0 0
    %924 = vmatpush.bf16.msra.mxu0 0
    %925 = vmatpush.bf16.msra.mxu0 0
    %926 = vmatpush.bf16.msra.mxu0 %v914
    %927 = vmatpush.bf16.msra.mxu0 %v913
    %928 = vmatmul.bf16.gmra.mxu0 %v918
    %v929 = vpop.f32.mrf.mxu0
    %v930 = vadd.f32 0.0, %v929
    %v931 = vpop.f32.mrf.mxu0
    %932 = vdwg.mxu0
    %v933 = vadd.f32 %v879, %v930
    %v934 = vadd.f32 %v881, %v930
    %v935 = vadd.f32 %v884, %v930
    %v936 = vadd.f32 %v886, %v930
    %v937 = vadd.f32 %v889, %v930
    %v938 = vadd.f32 %v891, %v930
    %v939 = vadd.f32 %v894, %v930
    %v940 = vtanh.pop %v933
    %v941 = vtanh.pop %v934
    %v942 = vtanh.pop %v935
    %v943 = vtanh.pop %v936
    %v944 = vtanh.pop %v937
    %v945 = vtanh.pop %v938
    %v946 = vtanh.pop %v939
    %v947 = vld [vmem:[%s7] sm:$0xff]
    %v948 = vld [vmem:[%s7 + $0x8] sm:$0xff]
    %v949 = vld [vmem:[%s7 + $0x10] sm:$0xff]
    %v950 = vld [vmem:[%s7 + $0x18] sm:$0xff]
    %v952 = vsel %vm212, %v940, 0
    %v955 = vsel %vm212, %v941, 0
    %v958 = vsel %vm212, %v942, 0
    %v961 = vsel %vm212, %v943, 0
    %v964 = vsel %vm212, %v944, 0
    %v967 = vsel %vm212, %v945, 0
    %v970 = vsel %vm212, %v946, 0
    %972 = vmatpush.msra.mxu0 0.0
    %973 = vmatpush.msra.mxu0 0.0
    %974 = vmatpush.msra.mxu0 0.0
    %975 = vmatpush.msra.mxu0 0.0
    %976 = vmatpush.msra.mxu0 0.0
    %977 = vmatpush.msra.mxu0 0.0
    %978 = vmatpush.msra.mxu0 0.0
    %979 = vmatpush.msra.mxu0 0.0
    %980 = vmatpush.msra.mxu0 0.0
    %981 = vmatpush.msra.mxu0 0.0
    %982 = vmatpush.msra.mxu0 0.0
    %983 = vmatpush.msra.mxu0 0.0
    %984 = vmatpush.msra.mxu0 %v950
    %985 = vmatpush.msra.mxu0 %v949
    %986 = vmatpush.msra.mxu0 %v948
    %987 = vmatpush.msra.mxu0 %v947
    %988 = vmatmul.f32.gmra.mxu0 %v952
    %v989 = vpop.f32.mrf.mxu0
    %v990 = vadd.f32 0.0, %v989
    %991 = vmatmul.f32.gmra.mxu0 %v955
    %v992 = vpop.f32.mrf.mxu0
    %v993 = vadd.f32 0.0, %v992
    %994 = vmatmul.f32.gmra.mxu0 %v958
    %v995 = vpop.f32.mrf.mxu0
    %v996 = vadd.f32 0.0, %v995
    %997 = vmatmul.f32.gmra.mxu0 %v961
    %v998 = vpop.f32.mrf.mxu0
    %v999 = vadd.f32 0.0, %v998
    %1000 = vmatmul.f32.gmra.mxu0 %v964
    %v1001 = vpop.f32.mrf.mxu0
    %v1002 = vadd.f32 0.0, %v1001
    %1003 = vmatmul.f32.gmra.mxu0 %v967
    %v1004 = vpop.f32.mrf.mxu0
    %v1005 = vadd.f32 0.0, %v1004
    %1006 = vmatmul.f32.gmra.mxu0 %v970
    %v1007 = vpop.f32.mrf.mxu0
    %v1008 = vadd.f32 0.0, %v1007
    %1009 = vdwg.mxu0
    %vm1010 = vcmask 7168
    %v1011 = vsel %vm1010, %v990, -inf
    %v1012 = vsel %vm1010, %v993, -inf
    %v1013 = vsel %vm1010, %v996, -inf
    %v1014 = vsel %vm1010, %v999, -inf
    %v1015 = vsel %vm1010, %v1002, -inf
    %v1016 = vmax.f32 %v1011, %v1015
    %v1017 = vsel %vm1010, %v1005, -inf
    %v1018 = vmax.f32 %v1012, %v1017
    %v1019 = vsel %vm1010, %v1008, -inf
    %v1020 = vmax.f32 %v1013, %v1019
    %v1021 = vmax.f32 %v1016, %v1018
    %v1022 = vmax.f32 %v1020, %v1014
    %v1023 = vmax.f32 %v1021, %v1022
    %v1024 = vsub.f32 %v990, %v1023
    %v1025 = vsub.f32 %v993, %v1023
    %v1026 = vsub.f32 %v996, %v1023
    %v1027 = vsub.f32 %v999, %v1023
    %v1028 = vsub.f32 %v1002, %v1023
    %v1029 = vsub.f32 %v1005, %v1023
    %v1030 = vsub.f32 %v1008, %v1023
    %v1031 = vmul.f32 %v1024, 1.442695
    %v1032 = vpow.pop %v1031
    %v1033 = vmul.f32 %v1025, 1.442695
    %v1034 = vpow.pop %v1033
    %v1035 = vmul.f32 %v1026, 1.442695
    %v1036 = vpow.pop %v1035
    %v1037 = vmul.f32 %v1027, 1.442695
    %v1038 = vpow.pop %v1037
    %v1039 = vmul.f32 %v1028, 1.442695
    %v1040 = vpow.pop %v1039
    %v1041 = vmul.f32 %v1029, 1.442695
    %v1042 = vpow.pop %v1041
    %v1043 = vmul.f32 %v1030, 1.442695
    %v1044 = vpow.pop %v1043
    %v1045 = vsel %vm1010, %v1032, 0.0
    %v1046 = vsel %vm1010, %v1034, 0.0
    %v1047 = vadd.f32 %v1045, %v1046
    %v1048 = vsel %vm1010, %v1036, 0.0
    %v1049 = vadd.f32 %v1047, %v1048
    %v1050 = vsel %vm1010, %v1038, 0.0
    %v1051 = vadd.f32 %v1049, %v1050
    %v1052 = vsel %vm1010, %v1040, 0.0
    %v1053 = vadd.f32 %v1051, %v1052
    %v1054 = vsel %vm1010, %v1042, 0.0
    %v1055 = vadd.f32 %v1053, %v1054
    %v1056 = vsel %vm1010, %v1044, 0.0
    %v1057 = vadd.f32 %v1055, %v1056
    %1059 = vset.pattern.permute.xlu0 0
    %1060 = vperm.xlu0 %1059, %v1032
    %v1061 = vpop.permute.xlu0 %1060
    %1064 = vset.pattern.permute.xlu0 0
    %1065 = vperm.xlu0 %1064, %v1034
    %v1066 = vpop.permute.xlu0 %1065
    %1069 = vset.pattern.permute.xlu0 0
    %1070 = vperm.xlu0 %1069, %v1036
    %v1071 = vpop.permute.xlu0 %1070
    %1074 = vset.pattern.permute.xlu0 0
    %1075 = vperm.xlu0 %1074, %v1038
    %v1076 = vpop.permute.xlu0 %1075
    %1079 = vset.pattern.permute.xlu0 0
    %1080 = vperm.xlu0 %1079, %v1040
    %v1081 = vpop.permute.xlu0 %1080
    %1084 = vset.pattern.permute.xlu0 0
    %1085 = vperm.xlu0 %1084, %v1042
    %v1086 = vpop.permute.xlu0 %1085
    %1089 = vset.pattern.permute.xlu0 0
    %1090 = vperm.xlu0 %1089, %v1044
    %v1091 = vpop.permute.xlu0 %1090
    %v1093 = vmul.f32 %v830, %v1061
    %v1094 = vmul.f32 %v831, %v1066
    %v1095 = vmul.f32 %v832, %v1071
    %v1096 = vmul.f32 %v833, %v1076
    %v1097 = vmul.f32 %v834, %v1081
    %v1098 = vmul.f32 %v835, %v1086
    %v1099 = vmul.f32 %v836, %v1091
    %v1100 = vsel %vm212, %v1093, 0.0
    %v1101 = vsel %vm212, %v1094, 0.0
    %v1102 = vadd.f32 %v1100, %v1101
    %v1103 = vsel %vm212, %v1095, 0.0
    %v1104 = vadd.f32 %v1102, %v1103
    %v1105 = vsel %vm212, %v1096, 0.0
    %v1106 = vadd.f32 %v1104, %v1105
    %v1107 = vsel %vm212, %v1097, 0.0
    %v1108 = vadd.f32 %v1106, %v1107
    %v1109 = vsel %vm212, %v1098, 0.0
    %v1110 = vadd.f32 %v1108, %v1109
    %v1111 = vsel %vm212, %v1099, 0.0
    %v1112 = vadd.f32 %v1110, %v1111
    %1114 = vset.pattern.permute.xlu0 0
    %1115 = vperm.xlu0 %1114, %v1057
    %v1116 = vpop.permute.xlu0 %1115
    %v1118 = vrcp.pop %v1116
    %v1119 = vmul.f32 %v1116, %v1118
    %v1120 = vsub.f32 1.0, %v1119
    %v1121 = vmul.f32 %v1118, %v1120
    %v1122 = vadd.f32 %v1118, %v1121
    %vm1123 = vweird.f32 %v1116
    %vm1124 = vweird.f32 %v1118
    %vm1125 = vmor %vm1123, %vm1124
    %v1126 = vsel %vm1125, %v1118, %v1122
    %v1127 = vand.u32 2147483647, %v1116
    %vm1128 = vcmp.eq.f32.partialorder %v1127, 8.507059e+37
    %v1129 = vand.u32 %v1116, 2147483648
    %v1130 = vor.u32 1.1754944e-38, %v1129
    %v1131 = vsel %vm1128, %v1130, %v1126
    %v1132 = vmul.f32 %v1112, %v1131
    %v1133 = vpack.c.bf16 %v1132, %v1132
    %v1134 = vld [vmem:[%s8] sm:$0xf]
    %v1135 = vld [vmem:[%s8 + $0x4] sm:$0xf]
    %v1136 = vld [vmem:[%s8 + $0x8] sm:$0xf]
    %v1137 = vld [vmem:[%s8 + $0xc] sm:$0xf]
    %v1142 = vunpack.c.l.b16 %v1134
    %v1143 = vunpack.c.l.b16 %v1135
    %v1144 = vunpack.c.l.b16 %v1136
    %v1145 = vunpack.c.l.b16 %v1137
    %v1146 = vpack.c.b16 %v1143, %v1142
    %v1147 = vpack.c.b16 %v1145, %v1144
    %v1151 = vsel %vm212, %v1133, 0
    %1153 = vmatpush.bf16.msra.mxu0 0
    %1154 = vmatpush.bf16.msra.mxu0 0
    %1155 = vmatpush.bf16.msra.mxu0 0
    %1156 = vmatpush.bf16.msra.mxu0 0
    %1157 = vmatpush.bf16.msra.mxu0 0
    %1158 = vmatpush.bf16.msra.mxu0 0
    %1159 = vmatpush.bf16.msra.mxu0 %v1147
    %1160 = vmatpush.bf16.msra.mxu0 %v1146
    %1161 = vmatmul.bf16.gmra.mxu0 %v1151
    %v1162 = vpop.f32.mrf.mxu0
    %v1163 = vadd.f32 0.0, %v1162
    %v1164 = vpop.f32.mrf.mxu0
    %1165 = vdwg.mxu0
    %1167 = vrot.lane.b32.xlu0 %v1163, 32
    %v1168 = vpop.permute.xlu0 %1167
    %v1170 = vadd.f32 %v930, %v1168
    %v1171 = vtanh.pop %v1170
    %v1172 = vpack.c.bf16 %v1171, %v1171
    %v1173 = vld [vmem:[%s9] sm:$0xf]
    %v1174 = vld [vmem:[%s9 + $0x4] sm:$0xf]
    %v1175 = vld [vmem:[%s9 + $0x8] sm:$0xf]
    %v1176 = vld [vmem:[%s9 + $0xc] sm:$0xf]
    %v1177 = vld [vmem:[%s10] sm:$0x1]
    %v1179 = vperm.slane %v1177, 0
    %1182 = vrot.lane.b32.xlu0 %v1172, 96
    %v1183 = vpop.permute.xlu0 %1182
    %v1188 = vunpack.c.l.b16 %v1173
    %v1189 = vunpack.c.l.b16 %v1174
    %v1190 = vunpack.c.l.b16 %v1175
    %v1191 = vunpack.c.l.b16 %v1176
    %v1192 = vpack.c.b16 %v1189, %v1188
    %v1193 = vpack.c.b16 %v1191, %v1190
    %v1197 = vsel %vm212, %v1183, 0
    %1199 = vmatpush.bf16.msra.mxu0 0
    %1200 = vmatpush.bf16.msra.mxu0 0
    %1201 = vmatpush.bf16.msra.mxu0 0
    %1202 = vmatpush.bf16.msra.mxu0 0
    %1203 = vmatpush.bf16.msra.mxu0 0
    %1204 = vmatpush.bf16.msra.mxu0 0
    %1205 = vmatpush.bf16.msra.mxu0 %v1193
    %1206 = vmatpush.bf16.msra.mxu0 %v1192
    %1207 = vmatmul.bf16.gmra.mxu0 %v1197
    %v1208 = vpop.f32.mrf.mxu0
    %v1209 = vadd.f32 %v1179, %v1208
    %v1210 = vpop.f32.mrf.mxu0
    %1211 = vdwg.mxu0
    %1212 = vmax.xlane.f32.xlu0 %v1209
    %v1213 = vpop.xlane.xlu0 %1212
    %v1214 = vsub.f32 %v1209, %v1213
    %v1215 = vmul.f32 %v1214, 1.442695
    %v1216 = vpow.pop %v1215
    %1217 = vadd.xlane.f32.xlu0 %v1216
    %v1218 = vpop.xlane.xlu0 %1217
    %v1219 = vlog2.pop %v1218
    %v1220 = vmul.f32 %v1219, 0.6931472
    %v1221 = vsub.f32 %v1214, %v1220
    %1222 = vst [vmem:[%s11] sm:$0xff] %v1221
    // Predicated region
    $region62: #{forward.1} parent=1 // pred_check
      _
    $region63: #{forward.1} parent=1 // pred_check_branch
      %1224 = sbr.rel (0) target = $region65
    $region64: #{forward.1} parent=1 // pred_region
      _
    $region65: #{forward.1} parent=1 // pred_fallthru
      _
    // Predicated region
    $region66: #{forward.1} parent=1 // pred_check
      _
    $region67: #{forward.1} parent=1 // pred_check_branch
      %1226 = sbr.rel (0) target = $region69
    $region68: #{forward.1} parent=1 // pred_region
      _
    $region69: #{forward.1} parent=1 // pred_fallthru
      _
    %1227 = vsyncpa [#allocation4], 1
    %1228 = vsyncpa [#allocation6], 1
    %1229 = vsyncpa [#allocation9], 1

</llo_original>
